<compile_context>
chip_gen: v6e
topology: v6e:2x2x1
jax: 0.10.0
libtpu: 0.0.40
codegen_flags: <defaults>
</compile_context>

<pallas_src>
import math
import jax
import jax.numpy as jnp
from jax import lax
from jax.experimental import pallas as pl
from jax.experimental.pallas import tpu as pltpu

CHUNK = 16  # scan chunk; 16 rows = one bf16 sublane tile


# ----------------------------- Pallas kernels ------------------------------

def ln_in_proj_kernel(x0_ref, x1_ref, g0_ref, b0_ref, g1_ref, b1_ref,
                      w_xz_ref, w_ex_ref, w_dtbc_ref, bias_ref,
                      x_ref, z_ref, dtf_ref, dtb_ref, bcf_ref, bcb_ref):
    """Fused LayerNorm(input0/input1) + all input-side projections (per batch).

    Two MXU matmuls total: [x|z] = LN(x0) @ Wxz ; [dt_f|dt_b|bc_f|bc_b] =
    SiLU(LN(x1) @ Wex) @ Wdtbc + bias.  dt is stored post-softplus, bf16.
    """
    bf16 = jnp.bfloat16
    d = x_ref.shape[1]
    n2 = bcf_ref.shape[1]

    def ln(v, g, b):
        mu = jnp.mean(v, axis=1, keepdims=True)
        var = jnp.mean(jnp.square(v - mu), axis=1, keepdims=True)
        return (v - mu) * lax.rsqrt(var + 1e-5) * g + b

    x0n = ln(x0_ref[...], g0_ref[...], b0_ref[...]).astype(bf16)
    x1n = ln(x1_ref[...], g1_ref[...], b1_ref[...]).astype(bf16)

    # in_proj of input0 -> x (scanned signal) and z (gate), one merged matmul.
    xz = jnp.dot(x0n, w_xz_ref[...], preferred_element_type=jnp.float32)
    x_ref[...] = xz[:, :d].astype(bf16)
    z_ref[...] = xz[:, d:].astype(bf16)

    # extra branch: only the x_e half is used (z_e of the reference is unused,
    # its weight half is dropped host-side and never computed).
    xe = jnp.dot(x1n, w_ex_ref[...], preferred_element_type=jnp.float32)
    xe = (xe * jax.nn.sigmoid(xe)).astype(bf16)                 # SiLU

    # merged per-direction projections; low-rank dt factor folded offline.
    dtbc = (jnp.dot(xe, w_dtbc_ref[...], preferred_element_type=jnp.float32)
            + bias_ref[...])
    dtf_ref[...] = jax.nn.softplus(dtbc[:, :d]).astype(bf16)
    dtb_ref[...] = jax.nn.softplus(dtbc[:, d:2 * d]).astype(bf16)
    bcf_ref[...] = dtbc[:, 2 * d:2 * d + n2].astype(bf16)
    bcb_ref[...] = dtbc[:, 2 * d + n2:].astype(bf16)


def mamba_core_kernel(x_ref, z_ref, dtf_ref, bcf_ref, dtb_ref, bcb_ref,
                      skip_ref, cwf_ref, cbf_ref, cwb_ref, cbb_ref,
                      Af_ref, Ab_ref, Df_ref, Db_ref, rmsw_ref, wout_ref,
                      out_ref, yacc_ref):
    """Fused depthwise conv + bidirectional selective scan + gate + combine +
    RMSNorm + out_proj + residual, one batch element per grid step."""
    f32 = jnp.float32
    L, d = yacc_ref.shape
    n = Af_ref.shape[0]
    K = cwf_ref.shape[0]
    nchunks = L // CHUNK

    def scan_dir(dt_ref, bc_ref, cw_ref, cb_ref, A_ref, D_ref,
                 reverse, accumulate):
        cw = cw_ref[...]
        cb = cb_ref[...]
        A = A_ref[...]
        Dv = D_ref[...]
        # Conv taps in window-offset order.  Backward = reverse -> causal conv
        # -> reverse == anti-causal conv with flipped taps (no ::-1 copies).
        taps = [cw[K - 1 - k:K - k, :] if reverse else cw[k:k + 1, :]
                for k in range(K)]

        def chunk_body(ci, carry):
            h, tail = carry
            c = nchunks - 1 - ci if reverse else ci
            s = pl.multiple_of(c * CHUNK, CHUNK)

            # -- depthwise conv + SiLU fused into the chunk (no (L,d) scratch);
            #    boundary rows come from the small loop-carried tail.
            xc = x_ref[pl.ds(s, CHUNK), :].astype(f32)           # (CHUNK, d)
            if reverse:
                xwin = jnp.concatenate([xc, tail], axis=0)       # rows s..s+C+K-2
                new_tail = xc[:K - 1, :]
            else:
                xwin = jnp.concatenate([tail, xc], axis=0)       # rows s-K+1..s+C-1
                new_tail = xc[CHUNK - (K - 1):, :]
            acc = cb + xwin[0:CHUNK, :] * taps[0]
            for k in range(1, K):
                acc = acc + xwin[k:k + CHUNK, :] * taps[k]
            u = acc * jax.nn.sigmoid(acc)                        # SiLU, (CHUNK, d)

            # -- chunk-wide precompute, hoisted off the serial recurrence.
            dt = dt_ref[pl.ds(s, CHUNK), :].astype(f32)          # softplus'd in A
            dtu = dt * u
            bcT = bc_ref[pl.ds(s, CHUNK), :].astype(f32).T       # (2n, CHUNK)
            dAs = [jnp.exp(dt[i:i + 1, :] * A) for i in range(CHUNK)]        # (n,d)
            Bdtus = [bcT[0:n, i:i + 1] * dtu[i:i + 1, :] for i in range(CHUNK)]  # (n,d)
            Cs = [bcT[n:2 * n, i:i + 1] for i in range(CHUNK)]               # (n,1)

            # -- serial recurrence: only h-FMA + C-reduction on the chain.
            ys = [None] * CHUNK
            order = range(CHUNK - 1, -1, -1) if reverse else range(CHUNK)
            for i in order:
                h = dAs[i] * h + Bdtus[i]
                ys[i] = jnp.sum(h * Cs[i], axis=0, keepdims=True)  # (1, d)

            y = jnp.concatenate(ys, axis=0) + Dv * u             # (CHUNK, d), ungated
            if accumulate:
                y = y + yacc_ref[pl.ds(s, CHUNK), :]
            yacc_ref[pl.ds(s, CHUNK), :] = y                     # one 16-row store
            return (h, new_tail)

        carry0 = (jnp.zeros((n, d), f32), jnp.zeros((K - 1, d), f32))
        lax.fori_loop(0, nchunks, chunk_body, carry0)

    scan_dir(dtf_ref, bcf_ref, cwf_ref, cbf_ref, Af_ref, Df_ref,
             reverse=False, accumulate=False)
    scan_dir(dtb_ref, bcb_ref, cwb_ref, cbb_ref, Ab_ref, Db_ref,
             reverse=True, accumulate=True)

    # Gate factored out of both directions (exact), combine (if_devide_out),
    # RMSNorm (use_norm), out_proj, residual — fused.
    z = z_ref[...].astype(f32)
    y = (yacc_ref[...] * 0.5) * (z * jax.nn.sigmoid(z))
    ms = jnp.mean(y * y, axis=1, keepdims=True)
    yn = y * lax.rsqrt(ms + 1e-5) * rmsw_ref[...]
    out_ref[...] = (jnp.dot(yn.astype(jnp.bfloat16), wout_ref[...],
                            preferred_element_type=jnp.float32)
                    + skip_ref[...])


# ------------------------------ call wrappers -------------------------------

def ln_in_proj(x0, x1, p):
    B_, L, D = x0.shape
    d = p["w_ex"].shape[1]
    n2 = 2 * p["d_state"]
    bf16 = jnp.bfloat16

    def pbat(last):
        return pl.BlockSpec((None, L, last), lambda b: (b, 0, 0))

    def wsp(a, c):
        return pl.BlockSpec((a, c), lambda b: (0, 0))

    out_shapes = (jax.ShapeDtypeStruct((B_, L, d), bf16),    # x
                  jax.ShapeDtypeStruct((B_, L, d), bf16),    # z
                  jax.ShapeDtypeStruct((B_, L, d), bf16),    # dt_f (post-softplus)
                  jax.ShapeDtypeStruct((B_, L, d), bf16),    # dt_b
                  jax.ShapeDtypeStruct((B_, L, n2), bf16),   # [B|C]_f
                  jax.ShapeDtypeStruct((B_, L, n2), bf16))   # [B|C]_b

    return pl.pallas_call(
        ln_in_proj_kernel,
        grid=(B_,),
        in_specs=[pbat(D), pbat(D),
                  wsp(1, D), wsp(1, D), wsp(1, D), wsp(1, D),
                  wsp(D, 2 * d), wsp(D, d),
                  wsp(d, 2 * d + 2 * n2), wsp(1, 2 * d + 2 * n2)],
        out_specs=(pbat(d), pbat(d), pbat(d), pbat(d), pbat(n2), pbat(n2)),
        out_shape=out_shapes,
        compiler_params=pltpu.CompilerParams(
            dimension_semantics=("parallel",),
            vmem_limit_bytes=64 * 1024 * 1024),
    )(x0, x1,
      p["ln0_g"].reshape(1, D), p["ln0_b"].reshape(1, D),
      p["ln1_g"].reshape(1, D), p["ln1_b"].reshape(1, D),
      p["w_xz"], p["w_ex"], p["w_dtbc"], p["bias_dtbc"].reshape(1, -1))


def mamba_core(x, z, dt_f, bc_f, dt_b, bc_b, skip, p):
    B_, L, d = x.shape
    D = skip.shape[-1]
    n = p["d_state"]
    K = p["conv_w_f"].shape[0]
    n2 = 2 * n

    def pbat(last):
        return pl.BlockSpec((None, L, last), lambda b: (b, 0, 0))

    def wsp(a, c):
        return pl.BlockSpec((a, c), lambda b: (0, 0))

    return pl.pallas_call(
        mamba_core_kernel,
        grid=(B_,),
        in_specs=[pbat(d), pbat(d), pbat(d), pbat(n2), pbat(d), pbat(n2), pbat(D),
                  wsp(K, d), wsp(1, d), wsp(K, d), wsp(1, d),
                  wsp(n, d), wsp(n, d), wsp(1, d), wsp(1, d),
                  wsp(1, d), wsp(d, D)],
        out_specs=pbat(D),
        out_shape=jax.ShapeDtypeStruct((B_, L, D), jnp.float32),
        scratch_shapes=[pltpu.VMEM((L, d), jnp.float32)],   # y accumulator only
        compiler_params=pltpu.CompilerParams(
            dimension_semantics=("parallel",),
            vmem_limit_bytes=64 * 1024 * 1024),
    )(x, z, dt_f, bc_f, dt_b, bc_b, skip,
      p["conv_w_f"], p["conv_b_f"].reshape(1, d),
      p["conv_w_b"], p["conv_b_b"].reshape(1, d),
      p["A_T_f"], p["A_T_b"], p["Dv_f"], p["Dv_b"],
      p["rms_w"].reshape(1, d), p["Wout_T"])


# ------------------------------ parameters ----------------------------------

def init_params(key, dim, d_state=8, d_conv=4, expand=1):
    d_inner = expand * dim
    dt_rank = math.ceil(dim / 16)
    keys = jax.random.split(key, 16)
    bf16 = jnp.bfloat16

    def w(k, shape, scale=0.02):
        return scale * jax.random.normal(k, shape, jnp.float32)

    win = w(keys[0], (dim, 2 * d_inner))        # in_proj(input0): [x | z]
    win_e = w(keys[1], (dim, 2 * d_inner))      # in_proj(input1): [x_e | z_e]

    p = {
        "ln0_g": jnp.ones((dim,), jnp.float32),
        "ln0_b": jnp.zeros((dim,), jnp.float32),
        "ln1_g": jnp.ones((dim,), jnp.float32),
        "ln1_b": jnp.zeros((dim,), jnp.float32),
        # matmul weights pre-cast to bf16 host-side (MXU operands).
        "w_xz": win.astype(bf16),                       # (D, 2d) merged [x|z]
        # TODO(synk): extra-branch gate z_e is unused in this cross variant, so
        # its half of the in_proj weight is dropped entirely (never computed).
        "w_ex": win_e[:, :d_inner].astype(bf16),
        "rms_w": jnp.ones((d_inner,), jnp.float32),
        "Wout_T": w(keys[2], (d_inner, dim)).astype(bf16),
        "d_state": d_state,
    }

    a_row = jnp.arange(1, d_state + 1, dtype=jnp.float32)  # A_log = log(1..N)
    wdt_cols, bc_cols, bias_cols = [], [], []
    for i, tag in enumerate(("f", "b")):
        base = 3 + 5 * i
        wx = w(keys[base + 1], (d_inner, dt_rank + 2 * d_state))
        wdt = w(keys[base + 2], (dt_rank, d_inner), 0.5)
        p[f"conv_w_{tag}"] = w(keys[base], (d_conv, d_inner), 0.1)
        p[f"conv_b_{tag}"] = jnp.zeros((d_inner,), jnp.float32)
        # Fold the low-rank dt projection into the x_dbl projection (exact):
        # dt_raw = (SiLU(x_e) @ Wx[:, :r]) @ Wdt + b = SiLU(x_e) @ (Wx[:, :r] @ Wdt) + b
        wdt_cols.append(wx[:, :dt_rank] @ wdt)            # (d_inner, d_inner)
        bc_cols.append(wx[:, dt_rank:])                   # (d_inner, 2*d_state)
        bias_cols.append(-2.0 + 0.1 * jax.random.normal(
            keys[base + 3], (d_inner,), jnp.float32))
        # A = -exp(A_log) = -(1..N); stored transposed as (n, d_inner)
        p[f"A_T_{tag}"] = -jnp.tile(a_row[:, None], (1, d_inner))
        p[f"Dv_{tag}"] = jnp.ones((1, d_inner), jnp.float32)

    # Merged [dt_f | dt_b | bc_f | bc_b] projection (single MXU dot in kernel A),
    # with the dt bias zero-padded over the bc columns.
    p["w_dtbc"] = jnp.concatenate(
        [wdt_cols[0], wdt_cols[1], bc_cols[0], bc_cols[1]], axis=1).astype(bf16)
    p["bias_dtbc"] = jnp.concatenate(
        [bias_cols[0], bias_cols[1], jnp.zeros((4 * d_state,), jnp.float32)])
    return p


# ------------------------------ forward pass ---------------------------------

def cross_mamba_block(input0, input1, p):
    B_, L, D = input0.shape
    assert L % CHUNK == 0, "sequence length (H*W) must be a multiple of 16"

    # (A) LayerNorms + all projections (2 merged matmuls), bf16 intermediates.
    x, z, dt_f, dt_b, bc_f, bc_b = ln_in_proj(input0, input1, p)

    # (B) fused conv + bidirectional scan + gate + combine + RMSNorm + out_proj
    #     + residual skip.  No wrapper-level transposes or reversals.
    return mamba_core(x, z, dt_f, bc_f, dt_b, bc_b, input0, p)


# ---------------------------------- main -------------------------------------

if __name__ == "__main__":
    key = jax.random.PRNGKey(0)
    B, H, W, dim = 2, 4, 4, 32
    L = H * W
    k0, k1, kp = jax.random.split(key, 3)
    input0 = jax.random.normal(k0, (B, L, dim), jnp.float32)
    input1 = jax.random.normal(k1, (B, L, dim), jnp.float32)
    params = init_params(kp, dim, d_state=8)

    out = cross_mamba_block(input0, input1, params)
    out = jax.block_until_ready(out)
    assert out.shape == (B, L, dim)
    assert jnp.all(jnp.isfinite(out))
    print("KERNEL_OK")
</pallas_src>

<mosaic_0001>
module attributes {stable_mosaic.version = 11 : i64} {
  func.func @ln_in_proj_kernel(%arg0: i32, %arg1: memref<1x16x32xf32, #tpu.memory_space<vmem>>, %arg2: memref<1x16x32xf32, #tpu.memory_space<vmem>>, %arg3: memref<1x32xf32, #tpu.memory_space<vmem>>, %arg4: memref<1x32xf32, #tpu.memory_space<vmem>>, %arg5: memref<1x32xf32, #tpu.memory_space<vmem>>, %arg6: memref<1x32xf32, #tpu.memory_space<vmem>>, %arg7: memref<32x64xbf16, #tpu.memory_space<vmem>>, %arg8: memref<32x32xbf16, #tpu.memory_space<vmem>>, %arg9: memref<32x96xbf16, #tpu.memory_space<vmem>>, %arg10: memref<1x96xf32, #tpu.memory_space<vmem>>, %arg11: memref<1x16x32xbf16, #tpu.memory_space<vmem>>, %arg12: memref<1x16x32xbf16, #tpu.memory_space<vmem>>, %arg13: memref<1x16x32xbf16, #tpu.memory_space<vmem>>, %arg14: memref<1x16x32xbf16, #tpu.memory_space<vmem>>, %arg15: memref<1x16x16xbf16, #tpu.memory_space<vmem>>, %arg16: memref<1x16x16xbf16, #tpu.memory_space<vmem>>) attributes {dimension_semantics = [#tpu.dimension_semantics<parallel>], iteration_bounds = array<i64: 2>, scalar_prefetch = 0 : i64, scratch_operands = 0 : i64, tpu.core_type = #tpu.core_type<tc>, window_params = [{transform_indices = @transform_0, window_bounds = array<i64: 1, 16, 32>}, {transform_indices = @transform_1, window_bounds = array<i64: 1, 16, 32>}, {pipeline_mode = #tpu.pipeline_mode<synchronous>, transform_indices = @transform_2, window_bounds = array<i64: 1, 32>}, {pipeline_mode = #tpu.pipeline_mode<synchronous>, transform_indices = @transform_3, window_bounds = array<i64: 1, 32>}, {pipeline_mode = #tpu.pipeline_mode<synchronous>, transform_indices = @transform_4, window_bounds = array<i64: 1, 32>}, {pipeline_mode = #tpu.pipeline_mode<synchronous>, transform_indices = @transform_5, window_bounds = array<i64: 1, 32>}, {pipeline_mode = #tpu.pipeline_mode<synchronous>, transform_indices = @transform_6, window_bounds = array<i64: 32, 64>}, {pipeline_mode = #tpu.pipeline_mode<synchronous>, transform_indices = @transform_7, window_bounds = array<i64: 32, 32>}, {pipeline_mode = #tpu.pipeline_mode<synchronous>, transform_indices = @transform_8, window_bounds = array<i64: 32, 96>}, {pipeline_mode = #tpu.pipeline_mode<synchronous>, transform_indices = @transform_9, window_bounds = array<i64: 1, 96>}, {transform_indices = @transform_10, window_bounds = array<i64: 1, 16, 32>}, {transform_indices = @transform_11, window_bounds = array<i64: 1, 16, 32>}, {transform_indices = @transform_12, window_bounds = array<i64: 1, 16, 32>}, {transform_indices = @transform_13, window_bounds = array<i64: 1, 16, 32>}, {transform_indices = @transform_14, window_bounds = array<i64: 1, 16, 16>}, {transform_indices = @transform_15, window_bounds = array<i64: 1, 16, 16>}]} {
    %c0 = arith.constant 0 : index
    %c0_0 = arith.constant 0 : index
    %c0_1 = arith.constant 0 : index
    %0 = vector.load %arg1[%c0, %c0_0, %c0_1] : memref<1x16x32xf32, #tpu.memory_space<vmem>>, vector<1x16x32xf32>
    %1 = vector.shape_cast %0 : vector<1x16x32xf32> to vector<16x32xf32>
    %c0_2 = arith.constant 0 : index
    %c0_3 = arith.constant 0 : index
    %2 = vector.load %arg3[%c0_2, %c0_3] : memref<1x32xf32, #tpu.memory_space<vmem>>, vector<1x32xf32>
    %c0_4 = arith.constant 0 : index
    %c0_5 = arith.constant 0 : index
    %3 = vector.load %arg4[%c0_4, %c0_5] : memref<1x32xf32, #tpu.memory_space<vmem>>, vector<1x32xf32>
    %cst = arith.constant dense<0.000000e+00> : vector<16xf32>
    %4 = vector.multi_reduction <add>, %1, %cst [1] : vector<16x32xf32> to vector<16xf32>
    %5 = vector.shape_cast %4 : vector<16xf32> to vector<16x1xf32>
    %cst_6 = arith.constant 3.200000e+01 : f32
    %6 = vector.broadcast %cst_6 : f32 to vector<16x1xf32>
    %7 = arith.divf %5, %6 : vector<16x1xf32>
    %8 = vector.broadcast %7 : vector<16x1xf32> to vector<16x32xf32>
    %9 = arith.subf %1, %8 : vector<16x32xf32>
    %10 = arith.mulf %9, %9 : vector<16x32xf32>
    %cst_7 = arith.constant dense<0.000000e+00> : vector<16xf32>
    %11 = vector.multi_reduction <add>, %10, %cst_7 [1] : vector<16x32xf32> to vector<16xf32>
    %12 = vector.shape_cast %11 : vector<16xf32> to vector<16x1xf32>
    %cst_8 = arith.constant 3.200000e+01 : f32
    %13 = vector.broadcast %cst_8 : f32 to vector<16x1xf32>
    %14 = arith.divf %12, %13 : vector<16x1xf32>
    %15 = vector.broadcast %7 : vector<16x1xf32> to vector<16x32xf32>
    %16 = arith.subf %1, %15 : vector<16x32xf32>
    %cst_9 = arith.constant 9.99999974E-6 : f32
    %17 = vector.broadcast %cst_9 : f32 to vector<16x1xf32>
    %18 = arith.addf %14, %17 : vector<16x1xf32>
    %19 = math.rsqrt %18 : vector<16x1xf32>
    %20 = vector.broadcast %19 : vector<16x1xf32> to vector<16x32xf32>
    %21 = arith.mulf %16, %20 : vector<16x32xf32>
    %22 = vector.broadcast %2 : vector<1x32xf32> to vector<16x32xf32>
    %23 = arith.mulf %21, %22 : vector<16x32xf32>
    %24 = vector.broadcast %3 : vector<1x32xf32> to vector<16x32xf32>
    %25 = arith.addf %23, %24 : vector<16x32xf32>
    %26 = arith.truncf %25 : vector<16x32xf32> to vector<16x32xbf16>
    %c0_10 = arith.constant 0 : index
    %c0_11 = arith.constant 0 : index
    %c0_12 = arith.constant 0 : index
    %27 = vector.load %arg2[%c0_10, %c0_11, %c0_12] : memref<1x16x32xf32, #tpu.memory_space<vmem>>, vector<1x16x32xf32>
    %28 = vector.shape_cast %27 : vector<1x16x32xf32> to vector<16x32xf32>
    %c0_13 = arith.constant 0 : index
    %c0_14 = arith.constant 0 : index
    %29 = vector.load %arg5[%c0_13, %c0_14] : memref<1x32xf32, #tpu.memory_space<vmem>>, vector<1x32xf32>
    %c0_15 = arith.constant 0 : index
    %c0_16 = arith.constant 0 : index
    %30 = vector.load %arg6[%c0_15, %c0_16] : memref<1x32xf32, #tpu.memory_space<vmem>>, vector<1x32xf32>
    %cst_17 = arith.constant dense<0.000000e+00> : vector<16xf32>
    %31 = vector.multi_reduction <add>, %28, %cst_17 [1] : vector<16x32xf32> to vector<16xf32>
    %32 = vector.shape_cast %31 : vector<16xf32> to vector<16x1xf32>
    %cst_18 = arith.constant 3.200000e+01 : f32
    %33 = vector.broadcast %cst_18 : f32 to vector<16x1xf32>
    %34 = arith.divf %32, %33 : vector<16x1xf32>
    %35 = vector.broadcast %34 : vector<16x1xf32> to vector<16x32xf32>
    %36 = arith.subf %28, %35 : vector<16x32xf32>
    %37 = arith.mulf %36, %36 : vector<16x32xf32>
    %cst_19 = arith.constant dense<0.000000e+00> : vector<16xf32>
    %38 = vector.multi_reduction <add>, %37, %cst_19 [1] : vector<16x32xf32> to vector<16xf32>
    %39 = vector.shape_cast %38 : vector<16xf32> to vector<16x1xf32>
    %cst_20 = arith.constant 3.200000e+01 : f32
    %40 = vector.broadcast %cst_20 : f32 to vector<16x1xf32>
    %41 = arith.divf %39, %40 : vector<16x1xf32>
    %42 = vector.broadcast %34 : vector<16x1xf32> to vector<16x32xf32>
    %43 = arith.subf %28, %42 : vector<16x32xf32>
    %cst_21 = arith.constant 9.99999974E-6 : f32
    %44 = vector.broadcast %cst_21 : f32 to vector<16x1xf32>
    %45 = arith.addf %41, %44 : vector<16x1xf32>
    %46 = math.rsqrt %45 : vector<16x1xf32>
    %47 = vector.broadcast %46 : vector<16x1xf32> to vector<16x32xf32>
    %48 = arith.mulf %43, %47 : vector<16x32xf32>
    %49 = vector.broadcast %29 : vector<1x32xf32> to vector<16x32xf32>
    %50 = arith.mulf %48, %49 : vector<16x32xf32>
    %51 = vector.broadcast %30 : vector<1x32xf32> to vector<16x32xf32>
    %52 = arith.addf %50, %51 : vector<16x32xf32>
    %53 = arith.truncf %52 : vector<16x32xf32> to vector<16x32xbf16>
    %c0_22 = arith.constant 0 : index
    %c0_23 = arith.constant 0 : index
    %54 = vector.load %arg7[%c0_22, %c0_23] : memref<32x64xbf16, #tpu.memory_space<vmem>>, vector<32x64xbf16>
    %cst_24 = arith.constant dense<0.000000e+00> : vector<16x64xf32>
    %55 = tpu.matmul %26, %54, %cst_24 {dimension_numbers = #tpu.dot_dimension_numbers<[1], [0], [0], [1], [0, 0, 1, 1], [], []>} : vector<16x32xbf16>, vector<32x64xbf16>, vector<16x64xf32> -> vector<16x64xf32>
    %56 = vector.extract_strided_slice %55 {offsets = [0, 0], sizes = [16, 32], strides = [1, 1]} : vector<16x64xf32> to vector<16x32xf32>
    %57 = arith.truncf %56 : vector<16x32xf32> to vector<16x32xbf16>
    %c0_25 = arith.constant 0 : index
    %c0_26 = arith.constant 0 : index
    %c0_27 = arith.constant 0 : index
    %58 = vector.load %arg11[%c0_25, %c0_26, %c0_27] : memref<1x16x32xbf16, #tpu.memory_space<vmem>>, vector<1x16x32xbf16>
    %59 = vector.shape_cast %58 : vector<1x16x32xbf16> to vector<16x32xbf16>
    %60 = vector.shape_cast %57 : vector<16x32xbf16> to vector<1x16x32xbf16>
    tpu.vector_store %arg11[%c0_25, %c0_26, %c0_27], %60 {strides = array<i32>} : memref<1x16x32xbf16, #tpu.memory_space<vmem>>, vector<1x16x32xbf16>,
    %61 = vector.extract_strided_slice %55 {offsets = [0, 32], sizes = [16, 32], strides = [1, 1]} : vector<16x64xf32> to vector<16x32xf32>
    %62 = arith.truncf %61 : vector<16x32xf32> to vector<16x32xbf16>
    %c0_28 = arith.constant 0 : index
    %c0_29 = arith.constant 0 : index
    %c0_30 = arith.constant 0 : index
    %63 = vector.load %arg12[%c0_28, %c0_29, %c0_30] : memref<1x16x32xbf16, #tpu.memory_space<vmem>>, vector<1x16x32xbf16>
    %64 = vector.shape_cast %63 : vector<1x16x32xbf16> to vector<16x32xbf16>
    %65 = vector.shape_cast %62 : vector<16x32xbf16> to vector<1x16x32xbf16>
    tpu.vector_store %arg12[%c0_28, %c0_29, %c0_30], %65 {strides = array<i32>} : memref<1x16x32xbf16, #tpu.memory_space<vmem>>, vector<1x16x32xbf16>,
    %c0_31 = arith.constant 0 : index
    %c0_32 = arith.constant 0 : index
    %66 = vector.load %arg8[%c0_31, %c0_32] : memref<32x32xbf16, #tpu.memory_space<vmem>>, vector<32x32xbf16>
    %cst_33 = arith.constant dense<0.000000e+00> : vector<16x32xf32>
    %67 = tpu.matmul %53, %66, %cst_33 {dimension_numbers = #tpu.dot_dimension_numbers<[1], [0], [0], [1], [0, 0, 1, 1], [], []>} : vector<16x32xbf16>, vector<32x32xbf16>, vector<16x32xf32> -> vector<16x32xf32>
    %68 = arith.negf %67 : vector<16x32xf32>
    %69 = math.exp %68 : vector<16x32xf32>
    %cst_34 = arith.constant 1.000000e+00 : f32
    %70 = vector.broadcast %cst_34 : f32 to vector<16x32xf32>
    %71 = arith.addf %70, %69 : vector<16x32xf32>
    %72 = arith.divf %70, %71 : vector<16x32xf32>
    %73 = arith.mulf %67, %72 : vector<16x32xf32>
    %74 = arith.truncf %73 : vector<16x32xf32> to vector<16x32xbf16>
    %c0_35 = arith.constant 0 : index
    %c0_36 = arith.constant 0 : index
    %75 = vector.load %arg9[%c0_35, %c0_36] : memref<32x96xbf16, #tpu.memory_space<vmem>>, vector<32x96xbf16>
    %cst_37 = arith.constant dense<0.000000e+00> : vector<16x96xf32>
    %76 = tpu.matmul %74, %75, %cst_37 {dimension_numbers = #tpu.dot_dimension_numbers<[1], [0], [0], [1], [0, 0, 1, 1], [], []>} : vector<16x32xbf16>, vector<32x96xbf16>, vector<16x96xf32> -> vector<16x96xf32>
    %c0_38 = arith.constant 0 : index
    %c0_39 = arith.constant 0 : index
    %77 = vector.load %arg10[%c0_38, %c0_39] : memref<1x96xf32, #tpu.memory_space<vmem>>, vector<1x96xf32>
    %78 = vector.broadcast %77 : vector<1x96xf32> to vector<16x96xf32>
    %79 = arith.addf %76, %78 : vector<16x96xf32>
    %80 = vector.extract_strided_slice %79 {offsets = [0, 0], sizes = [16, 32], strides = [1, 1]} : vector<16x96xf32> to vector<16x32xf32>
    %cst_40 = arith.constant 0.000000e+00 : f32
    %81 = vector.broadcast %cst_40 : f32 to vector<16x32xf32>
    %82 = arith.maximumf %80, %81 : vector<16x32xf32>
    %83 = vector.broadcast %cst_40 : f32 to vector<16x32xf32>
    %84 = arith.subf %80, %83 : vector<16x32xf32>
    %85 = arith.cmpf one, %84, %84 : vector<16x32xf32>
    %86 = vector.broadcast %cst_40 : f32 to vector<16x32xf32>
    %87 = arith.addf %80, %86 : vector<16x32xf32>
    %88 = math.absf %84 : vector<16x32xf32>
    %cst_41 = arith.constant 0.000000e+00 : f32
    %89 = vector.broadcast %cst_41 : f32 to vector<16x32xf32>
    %90 = arith.subf %89, %88 : vector<16x32xf32>
    %91 = math.exp %90 : vector<16x32xf32>
    %92 = math.log1p %91 : vector<16x32xf32>
    %93 = arith.addf %82, %92 : vector<16x32xf32>
    %94 = arith.select %85, %87, %93 : vector<16x32xi1>, vector<16x32xf32>
    %95 = arith.truncf %94 : vector<16x32xf32> to vector<16x32xbf16>
    %c0_42 = arith.constant 0 : index
    %c0_43 = arith.constant 0 : index
    %c0_44 = arith.constant 0 : index
    %96 = vector.load %arg13[%c0_42, %c0_43, %c0_44] : memref<1x16x32xbf16, #tpu.memory_space<vmem>>, vector<1x16x32xbf16>
    %97 = vector.shape_cast %96 : vector<1x16x32xbf16> to vector<16x32xbf16>
    %98 = vector.shape_cast %95 : vector<16x32xbf16> to vector<1x16x32xbf16>
    tpu.vector_store %arg13[%c0_42, %c0_43, %c0_44], %98 {strides = array<i32>} : memref<1x16x32xbf16, #tpu.memory_space<vmem>>, vector<1x16x32xbf16>,
    %99 = vector.extract_strided_slice %79 {offsets = [0, 32], sizes = [16, 32], strides = [1, 1]} : vector<16x96xf32> to vector<16x32xf32>
    %cst_45 = arith.constant 0.000000e+00 : f32
    %100 = vector.broadcast %cst_45 : f32 to vector<16x32xf32>
    %101 = arith.maximumf %99, %100 : vector<16x32xf32>
    %102 = vector.broadcast %cst_45 : f32 to vector<16x32xf32>
    %103 = arith.subf %99, %102 : vector<16x32xf32>
    %104 = arith.cmpf one, %103, %103 : vector<16x32xf32>
    %105 = vector.broadcast %cst_45 : f32 to vector<16x32xf32>
    %106 = arith.addf %99, %105 : vector<16x32xf32>
    %107 = math.absf %103 : vector<16x32xf32>
    %cst_46 = arith.constant 0.000000e+00 : f32
    %108 = vector.broadcast %cst_46 : f32 to vector<16x32xf32>
    %109 = arith.subf %108, %107 : vector<16x32xf32>
    %110 = math.exp %109 : vector<16x32xf32>
    %111 = math.log1p %110 : vector<16x32xf32>
    %112 = arith.addf %101, %111 : vector<16x32xf32>
    %113 = arith.select %104, %106, %112 : vector<16x32xi1>, vector<16x32xf32>
    %114 = arith.truncf %113 : vector<16x32xf32> to vector<16x32xbf16>
    %c0_47 = arith.constant 0 : index
    %c0_48 = arith.constant 0 : index
    %c0_49 = arith.constant 0 : index
    %115 = vector.load %arg14[%c0_47, %c0_48, %c0_49] : memref<1x16x32xbf16, #tpu.memory_space<vmem>>, vector<1x16x32xbf16>
    %116 = vector.shape_cast %115 : vector<1x16x32xbf16> to vector<16x32xbf16>
    %117 = vector.shape_cast %114 : vector<16x32xbf16> to vector<1x16x32xbf16>
    tpu.vector_store %arg14[%c0_47, %c0_48, %c0_49], %117 {strides = array<i32>} : memref<1x16x32xbf16, #tpu.memory_space<vmem>>, vector<1x16x32xbf16>,
    %118 = vector.extract_strided_slice %79 {offsets = [0, 64], sizes = [16, 16], strides = [1, 1]} : vector<16x96xf32> to vector<16x16xf32>
    %119 = arith.truncf %118 : vector<16x16xf32> to vector<16x16xbf16>
    %c0_50 = arith.constant 0 : index
    %c0_51 = arith.constant 0 : index
    %c0_52 = arith.constant 0 : index
    %120 = vector.load %arg15[%c0_50, %c0_51, %c0_52] : memref<1x16x16xbf16, #tpu.memory_space<vmem>>, vector<1x16x16xbf16>
    %121 = vector.shape_cast %120 : vector<1x16x16xbf16> to vector<16x16xbf16>
    %122 = vector.shape_cast %119 : vector<16x16xbf16> to vector<1x16x16xbf16>
    tpu.vector_store %arg15[%c0_50, %c0_51, %c0_52], %122 {strides = array<i32>} : memref<1x16x16xbf16, #tpu.memory_space<vmem>>, vector<1x16x16xbf16>,
    %123 = vector.extract_strided_slice %79 {offsets = [0, 80], sizes = [16, 16], strides = [1, 1]} : vector<16x96xf32> to vector<16x16xf32>
    %124 = arith.truncf %123 : vector<16x16xf32> to vector<16x16xbf16>
    %c0_53 = arith.constant 0 : index
    %c0_54 = arith.constant 0 : index
    %c0_55 = arith.constant 0 : index
    %125 = vector.load %arg16[%c0_53, %c0_54, %c0_55] : memref<1x16x16xbf16, #tpu.memory_space<vmem>>, vector<1x16x16xbf16>
    %126 = vector.shape_cast %125 : vector<1x16x16xbf16> to vector<16x16xbf16>
    %127 = vector.shape_cast %124 : vector<16x16xbf16> to vector<1x16x16xbf16>
    tpu.vector_store %arg16[%c0_53, %c0_54, %c0_55], %127 {strides = array<i32>} : memref<1x16x16xbf16, #tpu.memory_space<vmem>>, vector<1x16x16xbf16>,
    return
  }
  func.func @transform_0(%arg0: i32) -> (i32, i32, i32) {
    %c0_i32 = arith.constant 0 : i32
    %c0_i32_0 = arith.constant 0 : i32
    %c0_i32_1 = arith.constant 0 : i32
    return %arg0, %c0_i32, %c0_i32_0 : i32, i32, i32
  }
  func.func @transform_1(%arg0: i32) -> (i32, i32, i32) {
    %c0_i32 = arith.constant 0 : i32
    %c0_i32_0 = arith.constant 0 : i32
    %c0_i32_1 = arith.constant 0 : i32
    return %arg0, %c0_i32, %c0_i32_0 : i32, i32, i32
  }
  func.func @transform_2(%arg0: i32) -> (i32, i32) {
    %c0_i32 = arith.constant 0 : i32
    %c0_i32_0 = arith.constant 0 : i32
    %c0_i32_1 = arith.constant 0 : i32
    return %c0_i32, %c0_i32_0 : i32, i32
  }
  func.func @transform_3(%arg0: i32) -> (i32, i32) {
    %c0_i32 = arith.constant 0 : i32
    %c0_i32_0 = arith.constant 0 : i32
    %c0_i32_1 = arith.constant 0 : i32
    return %c0_i32, %c0_i32_0 : i32, i32
  }
  func.func @transform_4(%arg0: i32) -> (i32, i32) {
    %c0_i32 = arith.constant 0 : i32
    %c0_i32_0 = arith.constant 0 : i32
    %c0_i32_1 = arith.constant 0 : i32
    return %c0_i32, %c0_i32_0 : i32, i32
  }
  func.func @transform_5(%arg0: i32) -> (i32, i32) {
    %c0_i32 = arith.constant 0 : i32
    %c0_i32_0 = arith.constant 0 : i32
    %c0_i32_1 = arith.constant 0 : i32
    return %c0_i32, %c0_i32_0 : i32, i32
  }
  func.func @transform_6(%arg0: i32) -> (i32, i32) {
    %c0_i32 = arith.constant 0 : i32
    %c0_i32_0 = arith.constant 0 : i32
    %c0_i32_1 = arith.constant 0 : i32
    return %c0_i32, %c0_i32_0 : i32, i32
  }
  func.func @transform_7(%arg0: i32) -> (i32, i32) {
    %c0_i32 = arith.constant 0 : i32
    %c0_i32_0 = arith.constant 0 : i32
    %c0_i32_1 = arith.constant 0 : i32
    return %c0_i32, %c0_i32_0 : i32, i32
  }
  func.func @transform_8(%arg0: i32) -> (i32, i32) {
    %c0_i32 = arith.constant 0 : i32
    %c0_i32_0 = arith.constant 0 : i32
    %c0_i32_1 = arith.constant 0 : i32
    return %c0_i32, %c0_i32_0 : i32, i32
  }
  func.func @transform_9(%arg0: i32) -> (i32, i32) {
    %c0_i32 = arith.constant 0 : i32
    %c0_i32_0 = arith.constant 0 : i32
    %c0_i32_1 = arith.constant 0 : i32
    return %c0_i32, %c0_i32_0 : i32, i32
  }
  func.func @transform_10(%arg0: i32) -> (i32, i32, i32) {
    %c0_i32 = arith.constant 0 : i32
    %c0_i32_0 = arith.constant 0 : i32
    %c0_i32_1 = arith.constant 0 : i32
    return %arg0, %c0_i32, %c0_i32_0 : i32, i32, i32
  }
  func.func @transform_11(%arg0: i32) -> (i32, i32, i32) {
    %c0_i32 = arith.constant 0 : i32
    %c0_i32_0 = arith.constant 0 : i32
    %c0_i32_1 = arith.constant 0 : i32
    return %arg0, %c0_i32, %c0_i32_0 : i32, i32, i32
  }
  func.func @transform_12(%arg0: i32) -> (i32, i32, i32) {
    %c0_i32 = arith.constant 0 : i32
    %c0_i32_0 = arith.constant 0 : i32
    %c0_i32_1 = arith.constant 0 : i32
    return %arg0, %c0_i32, %c0_i32_0 : i32, i32, i32
  }
  func.func @transform_13(%arg0: i32) -> (i32, i32, i32) {
    %c0_i32 = arith.constant 0 : i32
    %c0_i32_0 = arith.constant 0 : i32
    %c0_i32_1 = arith.constant 0 : i32
    return %arg0, %c0_i32, %c0_i32_0 : i32, i32, i32
  }
  func.func @transform_14(%arg0: i32) -> (i32, i32, i32) {
    %c0_i32 = arith.constant 0 : i32
    %c0_i32_0 = arith.constant 0 : i32
    %c0_i32_1 = arith.constant 0 : i32
    return %arg0, %c0_i32, %c0_i32_0 : i32, i32, i32
  }
  func.func @transform_15(%arg0: i32) -> (i32, i32, i32) {
    %c0_i32 = arith.constant 0 : i32
    %c0_i32_0 = arith.constant 0 : i32
    %c0_i32_1 = arith.constant 0 : i32
    return %arg0, %c0_i32, %c0_i32_0 : i32, i32, i32
  }
}

</mosaic_0001>

<llo_original>
// kernel: tpu_custom_call.1
$region0: #{tpu_custom_call.1}
  #allocation0 [shape = 'u32[]', space=smem, size = 0x4, offset = 0x4, fixed_abs, tag = 'smem constant byte address 0x4 - core index']
  #allocation1 [shape = 'u32[144,128]{1,0:T(1,128)}', space=vmem, size = 0x12000, scoped, tag = 'internal scratch']
  %s0 = inlined_call_operand.hbm [shape: f32[2,16,32], index: 0, kind: input, shape index: {}]
  %s1 = inlined_call_operand.hbm [shape: f32[2,16,32], index: 1, kind: input, shape index: {}]
  %s2 = inlined_call_operand.vmem [shape: f32[1,32], index: 2, kind: input, shape index: {}]
  %s3 = inlined_call_operand.vmem [shape: f32[1,32], index: 3, kind: input, shape index: {}]
  %s4 = inlined_call_operand.vmem [shape: f32[1,32], index: 4, kind: input, shape index: {}]
  %s5 = inlined_call_operand.vmem [shape: f32[1,32], index: 5, kind: input, shape index: {}]
  %s6 = inlined_call_operand.hbm [shape: bf16[32,64], index: 6, kind: input, shape index: {}]
  %s7 = inlined_call_operand.hbm [shape: bf16[32,32], index: 7, kind: input, shape index: {}]
  %s8 = inlined_call_operand.hbm [shape: bf16[32,96], index: 8, kind: input, shape index: {}]
  %s9 = inlined_call_operand.vmem [shape: f32[1,96], index: 9, kind: input, shape index: {}]
  %s10 = inlined_call_operand.hbm [shape: bf16[2,16,32], index: 10, kind: output, shape index: {0}]
  %s11 = inlined_call_operand.hbm [shape: bf16[2,16,32], index: 11, kind: output, shape index: {1}]
  %s12 = inlined_call_operand.hbm [shape: bf16[2,16,32], index: 12, kind: output, shape index: {2}]
  %s13 = inlined_call_operand.hbm [shape: bf16[2,16,32], index: 13, kind: output, shape index: {3}]
  %s14 = inlined_call_operand.hbm [shape: bf16[2,16,16], index: 14, kind: output, shape index: {4}]
  %s15 = inlined_call_operand.hbm [shape: bf16[2,16,16], index: 15, kind: output, shape index: {5}]
  %16 = xla_tuple %s10, %s11, %s12, %s13, %s14, %s15
  %s17 = sld [smem:[#allocation0]]
  $region133: #{tpu_custom_call.1} parent=0
    _
  %s19 = ssub.s32 1, %s17
  %s20 = scalar_select 0, %s19, %s17
  $region1: #{tpu_custom_call.1} parent=0
    #allocation2 [shape = 'u8[16384]{0}', space=vmem, size = 0x4000, scoped, tag = 'input window, operand 0']
    #allocation3 [shape = 's32[2]{0}', space=sflag, size = 0x8, scoped, tag = 'scoped memory for tpu_custom_call.1']
    #allocation4 [shape = 's32[2]{0}', space=sflag, size = 0x8, scoped, tag = 'scoped memory for tpu_custom_call.1']
    #allocation5 [shape = 'u8[16384]{0}', space=vmem, size = 0x4000, scoped, tag = 'input window, operand 1']
    #allocation6 [shape = 's32[2]{0}', space=sflag, size = 0x8, scoped, tag = 'scoped memory for tpu_custom_call.1']
    #allocation7 [shape = 'u8[8192]{0}', space=vmem, size = 0x2000, scoped, tag = 'input window, operand 6, single buffered']
    #allocation8 [shape = 'u8[8192]{0}', space=vmem, size = 0x2000, scoped, tag = 'input window, operand 7, single buffered']
    #allocation9 [shape = 's32[1]{0}', space=sflag, size = 0x4, scoped, tag = 'scoped memory for tpu_custom_call.1']
    #allocation10 [shape = 'u8[8192]{0}', space=vmem, size = 0x2000, scoped, tag = 'input window, operand 8, single buffered']
    #allocation11 [shape = 'u8[8192]{0}', space=vmem, size = 0x2000, scoped, tag = 'output window, operand 0']
    #allocation12 [shape = 'u8[8192]{0}', space=vmem, size = 0x2000, scoped, tag = 'output window, operand 1']
    #allocation13 [shape = 's32[2]{0}', space=sflag, size = 0x8, scoped, tag = 'scoped memory for tpu_custom_call.1']
    #allocation14 [shape = 'u8[8192]{0}', space=vmem, size = 0x2000, scoped, tag = 'output window, operand 2']
    #allocation15 [shape = 'u8[8192]{0}', space=vmem, size = 0x2000, scoped, tag = 'output window, operand 3']
    #allocation16 [shape = 's32[2]{0}', space=sflag, size = 0x8, scoped, tag = 'scoped memory for tpu_custom_call.1']
    #allocation17 [shape = 'u8[8192]{0}', space=vmem, size = 0x2000, scoped, tag = 'output window, operand 4']
    #allocation18 [shape = 'u8[8192]{0}', space=vmem, size = 0x2000, scoped, tag = 'output window, operand 5']
    #allocation19 [shape = 's32[2]{0}', space=sflag, size = 0x8, scoped, tag = 'scoped memory for tpu_custom_call.1']
    %21 = vsyncpa [#allocation3], 0
    %s22 = scalar_lea.sflag [#allocation3], 1
    %23 = vsyncpa %s22, 0
    %24 = vsyncpa [#allocation6], 0
    %s25 = scalar_lea.sflag [#allocation6], 1
    %26 = vsyncpa %s25, 0
    %27 = vsyncpa [#allocation9], 0
    %28 = vsyncpa [#allocation4], 0
    %s29 = scalar_lea.sflag [#allocation4], 1
    %30 = vsyncpa %s29, 0
    %31 = vsyncpa [#allocation13], 0
    %s32 = scalar_lea.sflag [#allocation13], 1
    %33 = vsyncpa %s32, 0
    %34 = vsyncpa [#allocation16], 0
    %s35 = scalar_lea.sflag [#allocation16], 1
    %36 = vsyncpa %s35, 0
    %37 = vsyncpa [#allocation19], 0
    %s38 = scalar_lea.sflag [#allocation19], 1
    %39 = vsyncpa %s38, 0
    loop: start=0, step=1, limit=4
    $region2: #{tpu_custom_call.1} parent=1 // loop_pre_header
      _
    $region3: #{tpu_custom_call.1} parent=1 // loop_header
      %s41 = sphi 0, %s45
      %p42 = scmp.ge.s32.totalorder %s41, 4
      %s51 = sphi 0, %s53
      %s54 = sphi 0, %s51
      %s55 = sphi 0, %s54
      %s71 = sphi 0, %s55
      %s77 = sphi 0, %s79
      %s80 = sphi 0, %s77
      %s81 = sphi 0, %s80
      %s97 = sphi 0, %s81
      %s101 = sphi 0, %s101
      %s103 = sphi 0, %s101
      %s104 = sphi 0, %s103
      %s118 = sphi 0, %s104
      %s122 = sphi 0, %s122
      %s124 = sphi 0, %s122
      %s125 = sphi 0, %s124
      %s139 = sphi 0, %s125
      %s143 = sphi 0, %s143
      %s145 = sphi 0, %s143
      %s146 = sphi 0, %s145
      %s160 = sphi 0, %s146
      %s164 = sphi 0, %s164
      %s166 = sphi 0, %s164
      %s167 = sphi 0, %s166
      %s181 = sphi 0, %s167
      %s185 = sphi 0, %s185
      %s187 = sphi 0, %s185
      %s188 = sphi 0, %s187
      %s202 = sphi 0, %s188
      %s206 = sphi 0, %s206
      %s208 = sphi 0, %s206
      %s209 = sphi 0, %s208
      %s223 = sphi 0, %s209
      %s227 = sphi 0, %s227
      %s229 = sphi 0, %s227
      %s230 = sphi 0, %s229
      %s244 = sphi 0, %s230
      %s248 = sphi 0, %s248
      %s250 = sphi 0, %s248
      %s251 = sphi 0, %s250
      %s265 = sphi 0, %s251
      %s271 = sphi 0, %s273
      %s274 = sphi 0, %s271
      %s275 = sphi 0, %s274
      %s291 = sphi 0, %s275
      %s297 = sphi 0, %s299
      %s300 = sphi 0, %s297
      %s301 = sphi 0, %s300
      %s317 = sphi 0, %s301
      %s323 = sphi 0, %s325
      %s326 = sphi 0, %s323
      %s327 = sphi 0, %s326
      %s343 = sphi 0, %s327
      %s349 = sphi 0, %s351
      %s352 = sphi 0, %s349
      %s353 = sphi 0, %s352
      %s369 = sphi 0, %s353
      %s375 = sphi 0, %s377
      %s378 = sphi 0, %s375
      %s379 = sphi 0, %s378
      %s395 = sphi 0, %s379
      %s401 = sphi 0, %s403
      %s404 = sphi 0, %s401
      %s405 = sphi 0, %s404
      %s421 = sphi 0, %s405
    $region4: #{tpu_custom_call.1} parent=1 // loop_header_branch
      %44 = sbr.rel (%p42) target = $region8
    $region5: #{tpu_custom_call.1} parent=1 // loop_body
      %s46 = ssub.s32 %s41, 1
      %s47 = ssub.s32 %s41, 2
      %s48 = sadd.s32 %s41, 1
      %s49 = ssub.s32 %s41, %s48
      %p50 = scmp.eq.s32.totalorder %s49, 0
      %s52 = sadd.s32 %s51, 1
      %s53 = scalar_select %p50, %s51, %s52
      %p56 = pneg %p50
      %p57 = scmp.eq.s32.totalorder %s41, 1
      %p58 = por %p56, %p57
      %p59 = scmp.ne.s32.totalorder %s51, %s54
      %p60 = scmp.eq.s32.totalorder %s41, 0
      %p61 = por %p59, %p60
      %p62 = scmp.ne.s32.totalorder %s51, %s54
      %p63 = scmp.eq.s32.totalorder %s46, 1
      %p64 = por %p62, %p63
      %p65 = scmp.ne.s32.totalorder %s54, %s55
      %p66 = scmp.eq.s32.totalorder %s46, 0
      %p67 = por %p65, %p66
      %p68 = scmp.ne.s32.totalorder %s54, %s55
      %p69 = scmp.eq.s32.totalorder %s47, 1
      %p70 = por %p68, %p69
      %p72 = scmp.ne.s32.totalorder %s55, %s71
      %p73 = scmp.eq.s32.totalorder %s47, 0
      %p74 = por %p72, %p73
      %s75 = ssub.s32 %s41, %s48
      %p76 = scmp.eq.s32.totalorder %s75, 0
      %s78 = sadd.s32 %s77, 1
      %s79 = scalar_select %p76, %s77, %s78
      %p82 = pneg %p76
      %p83 = scmp.eq.s32.totalorder %s41, 1
      %p84 = por %p82, %p83
      %p85 = scmp.ne.s32.totalorder %s77, %s80
      %p86 = scmp.eq.s32.totalorder %s41, 0
      %p87 = por %p85, %p86
      %p88 = scmp.ne.s32.totalorder %s77, %s80
      %p89 = scmp.eq.s32.totalorder %s46, 1
      %p90 = por %p88, %p89
      %p91 = scmp.ne.s32.totalorder %s80, %s81
      %p92 = scmp.eq.s32.totalorder %s46, 0
      %p93 = por %p91, %p92
      %p94 = scmp.ne.s32.totalorder %s80, %s81
      %p95 = scmp.eq.s32.totalorder %s47, 1
      %p96 = por %p94, %p95
      %p98 = scmp.ne.s32.totalorder %s81, %s97
      %p99 = scmp.eq.s32.totalorder %s47, 0
      %p100 = por %p98, %p99
      %s102 = sadd.s32 %s101, 1
      %p105 = scmp.eq.s32.totalorder %s41, 1
      %p106 = scmp.ne.s32.totalorder %s101, %s103
      %p107 = scmp.eq.s32.totalorder %s41, 0
      %p108 = por %p106, %p107
      %p109 = scmp.ne.s32.totalorder %s101, %s103
      %p110 = scmp.eq.s32.totalorder %s46, 1
      %p111 = por %p109, %p110
      %p112 = scmp.ne.s32.totalorder %s103, %s104
      %p113 = scmp.eq.s32.totalorder %s46, 0
      %p114 = por %p112, %p113
      %p115 = scmp.ne.s32.totalorder %s103, %s104
      %p116 = scmp.eq.s32.totalorder %s47, 1
      %p117 = por %p115, %p116
      %p119 = scmp.ne.s32.totalorder %s104, %s118
      %p120 = scmp.eq.s32.totalorder %s47, 0
      %p121 = por %p119, %p120
      %s123 = sadd.s32 %s122, 1
      %p126 = scmp.eq.s32.totalorder %s41, 1
      %p127 = scmp.ne.s32.totalorder %s122, %s124
      %p128 = scmp.eq.s32.totalorder %s41, 0
      %p129 = por %p127, %p128
      %p130 = scmp.ne.s32.totalorder %s122, %s124
      %p131 = scmp.eq.s32.totalorder %s46, 1
      %p132 = por %p130, %p131
      %p133 = scmp.ne.s32.totalorder %s124, %s125
      %p134 = scmp.eq.s32.totalorder %s46, 0
      %p135 = por %p133, %p134
      %p136 = scmp.ne.s32.totalorder %s124, %s125
      %p137 = scmp.eq.s32.totalorder %s47, 1
      %p138 = por %p136, %p137
      %p140 = scmp.ne.s32.totalorder %s125, %s139
      %p141 = scmp.eq.s32.totalorder %s47, 0
      %p142 = por %p140, %p141
      %s144 = sadd.s32 %s143, 1
      %p147 = scmp.eq.s32.totalorder %s41, 1
      %p148 = scmp.ne.s32.totalorder %s143, %s145
      %p149 = scmp.eq.s32.totalorder %s41, 0
      %p150 = por %p148, %p149
      %p151 = scmp.ne.s32.totalorder %s143, %s145
      %p152 = scmp.eq.s32.totalorder %s46, 1
      %p153 = por %p151, %p152
      %p154 = scmp.ne.s32.totalorder %s145, %s146
      %p155 = scmp.eq.s32.totalorder %s46, 0
      %p156 = por %p154, %p155
      %p157 = scmp.ne.s32.totalorder %s145, %s146
      %p158 = scmp.eq.s32.totalorder %s47, 1
      %p159 = por %p157, %p158
      %p161 = scmp.ne.s32.totalorder %s146, %s160
      %p162 = scmp.eq.s32.totalorder %s47, 0
      %p163 = por %p161, %p162
      %s165 = sadd.s32 %s164, 1
      %p168 = scmp.eq.s32.totalorder %s41, 1
      %p169 = scmp.ne.s32.totalorder %s164, %s166
      %p170 = scmp.eq.s32.totalorder %s41, 0
      %p171 = por %p169, %p170
      %p172 = scmp.ne.s32.totalorder %s164, %s166
      %p173 = scmp.eq.s32.totalorder %s46, 1
      %p174 = por %p172, %p173
      %p175 = scmp.ne.s32.totalorder %s166, %s167
      %p176 = scmp.eq.s32.totalorder %s46, 0
      %p177 = por %p175, %p176
      %p178 = scmp.ne.s32.totalorder %s166, %s167
      %p179 = scmp.eq.s32.totalorder %s47, 1
      %p180 = por %p178, %p179
      %p182 = scmp.ne.s32.totalorder %s167, %s181
      %p183 = scmp.eq.s32.totalorder %s47, 0
      %p184 = por %p182, %p183
      %s186 = sadd.s32 %s185, 1
      %p189 = scmp.eq.s32.totalorder %s41, 1
      %p190 = scmp.ne.s32.totalorder %s185, %s187
      %p191 = scmp.eq.s32.totalorder %s41, 0
      %p192 = por %p190, %p191
      %p193 = scmp.ne.s32.totalorder %s185, %s187
      %p194 = scmp.eq.s32.totalorder %s46, 1
      %p195 = por %p193, %p194
      %p196 = scmp.ne.s32.totalorder %s187, %s188
      %p197 = scmp.eq.s32.totalorder %s46, 0
      %p198 = por %p196, %p197
      %p199 = scmp.ne.s32.totalorder %s187, %s188
      %p200 = scmp.eq.s32.totalorder %s47, 1
      %p201 = por %p199, %p200
      %p203 = scmp.ne.s32.totalorder %s188, %s202
      %p204 = scmp.eq.s32.totalorder %s47, 0
      %p205 = por %p203, %p204
      %s207 = sadd.s32 %s206, 1
      %p210 = scmp.eq.s32.totalorder %s41, 1
      %p211 = scmp.ne.s32.totalorder %s206, %s208
      %p212 = scmp.eq.s32.totalorder %s41, 0
      %p213 = por %p211, %p212
      %p214 = scmp.ne.s32.totalorder %s206, %s208
      %p215 = scmp.eq.s32.totalorder %s46, 1
      %p216 = por %p214, %p215
      %p217 = scmp.ne.s32.totalorder %s208, %s209
      %p218 = scmp.eq.s32.totalorder %s46, 0
      %p219 = por %p217, %p218
      %p220 = scmp.ne.s32.totalorder %s208, %s209
      %p221 = scmp.eq.s32.totalorder %s47, 1
      %p222 = por %p220, %p221
      %p224 = scmp.ne.s32.totalorder %s209, %s223
      %p225 = scmp.eq.s32.totalorder %s47, 0
      %p226 = por %p224, %p225
      %s228 = sadd.s32 %s227, 1
      %p231 = scmp.eq.s32.totalorder %s41, 1
      %p232 = scmp.ne.s32.totalorder %s227, %s229
      %p233 = scmp.eq.s32.totalorder %s41, 0
      %p234 = por %p232, %p233
      %p235 = scmp.ne.s32.totalorder %s227, %s229
      %p236 = scmp.eq.s32.totalorder %s46, 1
      %p237 = por %p235, %p236
      %p238 = scmp.ne.s32.totalorder %s229, %s230
      %p239 = scmp.eq.s32.totalorder %s46, 0
      %p240 = por %p238, %p239
      %p241 = scmp.ne.s32.totalorder %s229, %s230
      %p242 = scmp.eq.s32.totalorder %s47, 1
      %p243 = por %p241, %p242
      %p245 = scmp.ne.s32.totalorder %s230, %s244
      %p246 = scmp.eq.s32.totalorder %s47, 0
      %p247 = por %p245, %p246
      %s249 = sadd.s32 %s248, 1
      %p252 = scmp.eq.s32.totalorder %s41, 1
      %p253 = scmp.ne.s32.totalorder %s248, %s250
      %p254 = scmp.eq.s32.totalorder %s41, 0
      %p255 = por %p253, %p254
      %p256 = scmp.ne.s32.totalorder %s248, %s250
      %p257 = scmp.eq.s32.totalorder %s46, 1
      %p258 = por %p256, %p257
      %p259 = scmp.ne.s32.totalorder %s250, %s251
      %p260 = scmp.eq.s32.totalorder %s46, 0
      %p261 = por %p259, %p260
      %p262 = scmp.ne.s32.totalorder %s250, %s251
      %p263 = scmp.eq.s32.totalorder %s47, 1
      %p264 = por %p262, %p263
      %p266 = scmp.ne.s32.totalorder %s251, %s265
      %p267 = scmp.eq.s32.totalorder %s47, 0
      %p268 = por %p266, %p267
      %s269 = ssub.s32 %s41, %s48
      %p270 = scmp.eq.s32.totalorder %s269, 0
      %s272 = sadd.s32 %s271, 1
      %s273 = scalar_select %p270, %s271, %s272
      %p276 = pneg %p270
      %p277 = scmp.eq.s32.totalorder %s41, 1
      %p278 = por %p276, %p277
      %p279 = scmp.ne.s32.totalorder %s271, %s274
      %p280 = scmp.eq.s32.totalorder %s41, 0
      %p281 = por %p279, %p280
      %p282 = scmp.ne.s32.totalorder %s271, %s274
      %p283 = scmp.eq.s32.totalorder %s46, 1
      %p284 = por %p282, %p283
      %p285 = scmp.ne.s32.totalorder %s274, %s275
      %p286 = scmp.eq.s32.totalorder %s46, 0
      %p287 = por %p285, %p286
      %p288 = scmp.ne.s32.totalorder %s274, %s275
      %p289 = scmp.eq.s32.totalorder %s47, 1
      %p290 = por %p288, %p289
      %p292 = scmp.ne.s32.totalorder %s275, %s291
      %p293 = scmp.eq.s32.totalorder %s47, 0
      %p294 = por %p292, %p293
      %s295 = ssub.s32 %s41, %s48
      %p296 = scmp.eq.s32.totalorder %s295, 0
      %s298 = sadd.s32 %s297, 1
      %s299 = scalar_select %p296, %s297, %s298
      %p302 = pneg %p296
      %p303 = scmp.eq.s32.totalorder %s41, 1
      %p304 = por %p302, %p303
      %p305 = scmp.ne.s32.totalorder %s297, %s300
      %p306 = scmp.eq.s32.totalorder %s41, 0
      %p307 = por %p305, %p306
      %p308 = scmp.ne.s32.totalorder %s297, %s300
      %p309 = scmp.eq.s32.totalorder %s46, 1
      %p310 = por %p308, %p309
      %p311 = scmp.ne.s32.totalorder %s300, %s301
      %p312 = scmp.eq.s32.totalorder %s46, 0
      %p313 = por %p311, %p312
      %p314 = scmp.ne.s32.totalorder %s300, %s301
      %p315 = scmp.eq.s32.totalorder %s47, 1
      %p316 = por %p314, %p315
      %p318 = scmp.ne.s32.totalorder %s301, %s317
      %p319 = scmp.eq.s32.totalorder %s47, 0
      %p320 = por %p318, %p319
      %s321 = ssub.s32 %s41, %s48
      %p322 = scmp.eq.s32.totalorder %s321, 0
      %s324 = sadd.s32 %s323, 1
      %s325 = scalar_select %p322, %s323, %s324
      %p328 = pneg %p322
      %p329 = scmp.eq.s32.totalorder %s41, 1
      %p330 = por %p328, %p329
      %p331 = scmp.ne.s32.totalorder %s323, %s326
      %p332 = scmp.eq.s32.totalorder %s41, 0
      %p333 = por %p331, %p332
      %p334 = scmp.ne.s32.totalorder %s323, %s326
      %p335 = scmp.eq.s32.totalorder %s46, 1
      %p336 = por %p334, %p335
      %p337 = scmp.ne.s32.totalorder %s326, %s327
      %p338 = scmp.eq.s32.totalorder %s46, 0
      %p339 = por %p337, %p338
      %p340 = scmp.ne.s32.totalorder %s326, %s327
      %p341 = scmp.eq.s32.totalorder %s47, 1
      %p342 = por %p340, %p341
      %p344 = scmp.ne.s32.totalorder %s327, %s343
      %p345 = scmp.eq.s32.totalorder %s47, 0
      %p346 = por %p344, %p345
      %s347 = ssub.s32 %s41, %s48
      %p348 = scmp.eq.s32.totalorder %s347, 0
      %s350 = sadd.s32 %s349, 1
      %s351 = scalar_select %p348, %s349, %s350
      %p354 = pneg %p348
      %p355 = scmp.eq.s32.totalorder %s41, 1
      %p356 = por %p354, %p355
      %p357 = scmp.ne.s32.totalorder %s349, %s352
      %p358 = scmp.eq.s32.totalorder %s41, 0
      %p359 = por %p357, %p358
      %p360 = scmp.ne.s32.totalorder %s349, %s352
      %p361 = scmp.eq.s32.totalorder %s46, 1
      %p362 = por %p360, %p361
      %p363 = scmp.ne.s32.totalorder %s352, %s353
      %p364 = scmp.eq.s32.totalorder %s46, 0
      %p365 = por %p363, %p364
      %p366 = scmp.ne.s32.totalorder %s352, %s353
      %p367 = scmp.eq.s32.totalorder %s47, 1
      %p368 = por %p366, %p367
      %p370 = scmp.ne.s32.totalorder %s353, %s369
      %p371 = scmp.eq.s32.totalorder %s47, 0
      %p372 = por %p370, %p371
      %s373 = ssub.s32 %s41, %s48
      %p374 = scmp.eq.s32.totalorder %s373, 0
      %s376 = sadd.s32 %s375, 1
      %s377 = scalar_select %p374, %s375, %s376
      %p380 = pneg %p374
      %p381 = scmp.eq.s32.totalorder %s41, 1
      %p382 = por %p380, %p381
      %p383 = scmp.ne.s32.totalorder %s375, %s378
      %p384 = scmp.eq.s32.totalorder %s41, 0
      %p385 = por %p383, %p384
      %p386 = scmp.ne.s32.totalorder %s375, %s378
      %p387 = scmp.eq.s32.totalorder %s46, 1
      %p388 = por %p386, %p387
      %p389 = scmp.ne.s32.totalorder %s378, %s379
      %p390 = scmp.eq.s32.totalorder %s46, 0
      %p391 = por %p389, %p390
      %p392 = scmp.ne.s32.totalorder %s378, %s379
      %p393 = scmp.eq.s32.totalorder %s47, 1
      %p394 = por %p392, %p393
      %p396 = scmp.ne.s32.totalorder %s379, %s395
      %p397 = scmp.eq.s32.totalorder %s47, 0
      %p398 = por %p396, %p397
      %s399 = ssub.s32 %s41, %s48
      %p400 = scmp.eq.s32.totalorder %s399, 0
      %s402 = sadd.s32 %s401, 1
      %s403 = scalar_select %p400, %s401, %s402
      %p406 = pneg %p400
      %p407 = scmp.eq.s32.totalorder %s41, 1
      %p408 = por %p406, %p407
      %p409 = scmp.ne.s32.totalorder %s401, %s404
      %p410 = scmp.eq.s32.totalorder %s41, 0
      %p411 = por %p409, %p410
      %p412 = scmp.ne.s32.totalorder %s401, %s404
      %p413 = scmp.eq.s32.totalorder %s46, 1
      %p414 = por %p412, %p413
      %p415 = scmp.ne.s32.totalorder %s404, %s405
      %p416 = scmp.eq.s32.totalorder %s46, 0
      %p417 = por %p415, %p416
      %p418 = scmp.ne.s32.totalorder %s404, %s405
      %p419 = scmp.eq.s32.totalorder %s47, 1
      %p420 = por %p418, %p419
      %p422 = scmp.ne.s32.totalorder %s405, %s421
      %p423 = scmp.eq.s32.totalorder %s47, 0
      %p424 = por %p422, %p423
      %p425 = scmp.le.s32.totalorder 1, %s41
      %p426 = scmp.lt.s32.totalorder %s41, 3
      %p427 = pnand %p425, %p426
      %p428 = pneg %p427
      // Predicated region
      $region9: #{tpu_custom_call.1} parent=5 // pred_check
        _
      $region10: #{tpu_custom_call.1} parent=5 // pred_check_branch
        %430 = sbr.rel (%p427) target = $region12
      $region11: #{tpu_custom_call.1} parent=5 // pred_region
        %s431 = ssub.s32 %s41, 1
        // Predicated region
        $region13: #{tpu_custom_call.1} parent=11 // pred_check
          %p432 = pneg %p114
        $region14: #{tpu_custom_call.1} parent=11 // pred_check_branch
          %434 = sbr.rel (%p432) target = $region16
        $region15: #{tpu_custom_call.1} parent=11 // pred_region
          _
        $region16: #{tpu_custom_call.1} parent=11 // pred_fallthru
          _
        // Predicated region
        $region17: #{tpu_custom_call.1} parent=11 // pred_check
          %p435 = pneg %p135
        $region18: #{tpu_custom_call.1} parent=11 // pred_check_branch
          %437 = sbr.rel (%p435) target = $region20
        $region19: #{tpu_custom_call.1} parent=11 // pred_region
          _
        $region20: #{tpu_custom_call.1} parent=11 // pred_fallthru
          _
        // Predicated region
        $region21: #{tpu_custom_call.1} parent=11 // pred_check
          %p438 = pneg %p156
        $region22: #{tpu_custom_call.1} parent=11 // pred_check_branch
          %440 = sbr.rel (%p438) target = $region24
        $region23: #{tpu_custom_call.1} parent=11 // pred_region
          _
        $region24: #{tpu_custom_call.1} parent=11 // pred_fallthru
          _
        // Predicated region
        $region25: #{tpu_custom_call.1} parent=11 // pred_check
          %p441 = pneg %p177
        $region26: #{tpu_custom_call.1} parent=11 // pred_check_branch
          %443 = sbr.rel (%p441) target = $region28
        $region27: #{tpu_custom_call.1} parent=11 // pred_region
          _
        $region28: #{tpu_custom_call.1} parent=11 // pred_fallthru
          _
        // Predicated region
        $region29: #{tpu_custom_call.1} parent=11 // pred_check
          %p444 = pneg %p198
        $region30: #{tpu_custom_call.1} parent=11 // pred_check_branch
          %446 = sbr.rel (%p444) target = $region32
        $region31: #{tpu_custom_call.1} parent=11 // pred_region
          %s448 = ssub.s32 256, 256
          %449 = vsyncadd [#allocation6], %s448
          %s450 = sshll.u32 [#allocation7], 4
          %s451 = int_to_ptr.vmem [resolvable:$true] %s450
          %456 = dma.hbm_to_vmem [thread:$0]  %s6, 256, %s451, [#allocation6], 64, 64, 4
        $region32: #{tpu_custom_call.1} parent=11 // pred_fallthru
          _
        // Predicated region
        $region33: #{tpu_custom_call.1} parent=11 // pred_check
          %p457 = pneg %p219
        $region34: #{tpu_custom_call.1} parent=11 // pred_check_branch
          %459 = sbr.rel (%p457) target = $region36
        $region35: #{tpu_custom_call.1} parent=11 // pred_region
          %s461 = ssub.s32 256, 256
          %462 = vsyncadd [#allocation9], %s461
          %s463 = sshll.u32 [#allocation8], 4
          %s464 = int_to_ptr.vmem [resolvable:$true] %s463
          %469 = dma.hbm_to_vmem [thread:$0]  %s7, 256, %s464, [#allocation9], 64, 64, 4
        $region36: #{tpu_custom_call.1} parent=11 // pred_fallthru
          _
        // Predicated region
        $region37: #{tpu_custom_call.1} parent=11 // pred_check
          %p470 = pneg %p240
        $region38: #{tpu_custom_call.1} parent=11 // pred_check_branch
          %472 = sbr.rel (%p470) target = $region40
        $region39: #{tpu_custom_call.1} parent=11 // pred_region
          %s474 = ssub.s32 256, 256
          %475 = vsyncadd [#allocation9], %s474
          %s476 = sshll.u32 [#allocation10], 4
          %s477 = int_to_ptr.vmem [resolvable:$true] %s476
          %482 = dma.hbm_to_vmem [thread:$0]  %s8, 256, %s477, [#allocation9], 64, 64, 4
        $region40: #{tpu_custom_call.1} parent=11 // pred_fallthru
          _
        // Predicated region
        $region41: #{tpu_custom_call.1} parent=11 // pred_check
          %p483 = pneg %p261
        $region42: #{tpu_custom_call.1} parent=11 // pred_check_branch
          %485 = sbr.rel (%p483) target = $region44
        $region43: #{tpu_custom_call.1} parent=11 // pred_region
          _
        $region44: #{tpu_custom_call.1} parent=11 // pred_fallthru
          _
      $region12: #{tpu_custom_call.1} parent=5 // pred_fallthru
        _
      %p486 = scmp.lt.s32.totalorder %s41, 2
      // Predicated region
      $region45: #{tpu_custom_call.1} parent=5 // pred_check
        %p487 = pneg %p486
      $region46: #{tpu_custom_call.1} parent=5 // pred_check_branch
        %489 = sbr.rel (%p487) target = $region48
      $region47: #{tpu_custom_call.1} parent=5 // pred_region
        // Predicated region
        $region49: #{tpu_custom_call.1} parent=47 // pred_check
          %p490 = pneg %p61
        $region50: #{tpu_custom_call.1} parent=47 // pred_check_branch
          %492 = sbr.rel (%p490) target = $region52
        $region51: #{tpu_custom_call.1} parent=47 // pred_region
          %s493 = sand.u32 %s51, 1
          %s494 = scalar_lea.sflag [#allocation3], %s493
          %s495 = sand.u32 %s51, 1
          %s496 = smul.addr %s495, 16
          %s497 = scalar_lea.vmem [#allocation2], %s496
          %s499 = ssub.s32 256, 256
          %500 = vsyncadd %s494, %s499
          %s501 = smul.addr %s41, 2
          %s502 = smul.addr %s501, 128
          %s503 = scalar_lea.hbm %s0, %s502
          %s504 = sshll.u32 %s497, 4
          %s505 = int_to_ptr.vmem [resolvable:$true] %s504
          %510 = dma.hbm_to_vmem [thread:$0]  %s503, 256, %s505, %s494, 128, 128, 8
        $region52: #{tpu_custom_call.1} parent=47 // pred_fallthru
          _
        // Predicated region
        $region53: #{tpu_custom_call.1} parent=47 // pred_check
          %p511 = pneg %p87
        $region54: #{tpu_custom_call.1} parent=47 // pred_check_branch
          %513 = sbr.rel (%p511) target = $region56
        $region55: #{tpu_custom_call.1} parent=47 // pred_region
          %s514 = sand.u32 %s41, 1
          %s515 = scalar_lea.sflag [#allocation6], %s514
          %s516 = sand.u32 %s77, 1
          %s517 = smul.addr %s516, 16
          %s518 = scalar_lea.vmem [#allocation5], %s517
          %s520 = ssub.s32 256, 256
          %521 = vsyncadd %s515, %s520
          %s522 = smul.addr %s41, 2
          %s523 = smul.addr %s522, 128
          %s524 = scalar_lea.hbm %s1, %s523
          %s525 = sshll.u32 %s518, 4
          %s526 = int_to_ptr.vmem [resolvable:$true] %s525
          %531 = dma.hbm_to_vmem [thread:$0]  %s524, 256, %s526, %s515, 128, 128, 8
        $region56: #{tpu_custom_call.1} parent=47 // pred_fallthru
          _
      $region48: #{tpu_custom_call.1} parent=5 // pred_fallthru
        _
      %p532 = scmp.le.s32.totalorder 1, %s41
      %p533 = scmp.lt.s32.totalorder %s41, 3
      %p534 = pnand %p532, %p533
      %p535 = pneg %p534
      // Predicated region
      $region57: #{tpu_custom_call.1} parent=5 // pred_check
        _
      $region58: #{tpu_custom_call.1} parent=5 // pred_check_branch
        %537 = sbr.rel (%p534) target = $region60
      $region59: #{tpu_custom_call.1} parent=5 // pred_region
        %s538 = ssub.s32 %s41, 1
        %s539 = sand.u32 %s54, 1
        %s540 = scalar_lea.sflag [#allocation3], %s539
        %s541 = sand.u32 %s54, 1
        %s542 = smul.addr %s541, 16
        %s543 = scalar_lea.vmem [#allocation2], %s542
        // Predicated region
        $region61: #{tpu_custom_call.1} parent=59 // pred_check
          %p544 = pneg %p67
        $region62: #{tpu_custom_call.1} parent=59 // pred_check_branch
          %546 = sbr.rel (%p544) target = $region64
        $region63: #{tpu_custom_call.1} parent=59 // pred_region
          %547 = dma.done %s540, 256
        $region64: #{tpu_custom_call.1} parent=59 // pred_fallthru
          _
        %s548 = sand.u32 %s46, 1
        %s549 = scalar_lea.sflag [#allocation6], %s548
        %s550 = sand.u32 %s80, 1
        %s551 = smul.addr %s550, 16
        %s552 = scalar_lea.vmem [#allocation5], %s551
        // Predicated region
        $region65: #{tpu_custom_call.1} parent=59 // pred_check
          %p553 = pneg %p93
        $region66: #{tpu_custom_call.1} parent=59 // pred_check_branch
          %555 = sbr.rel (%p553) target = $region68
        $region67: #{tpu_custom_call.1} parent=59 // pred_region
          %556 = dma.done %s549, 256
        $region68: #{tpu_custom_call.1} parent=59 // pred_fallthru
          _
        // Predicated region
        $region69: #{tpu_custom_call.1} parent=59 // pred_check
          %p557 = pneg %p198
        $region70: #{tpu_custom_call.1} parent=59 // pred_check_branch
          %559 = sbr.rel (%p557) target = $region72
        $region71: #{tpu_custom_call.1} parent=59 // pred_region
          %560 = dma.done [#allocation6], 256
        $region72: #{tpu_custom_call.1} parent=59 // pred_fallthru
          _
        // Predicated region
        $region73: #{tpu_custom_call.1} parent=59 // pred_check
          %p561 = pneg %p219
        $region74: #{tpu_custom_call.1} parent=59 // pred_check_branch
          %563 = sbr.rel (%p561) target = $region76
        $region75: #{tpu_custom_call.1} parent=59 // pred_region
          %564 = dma.done [#allocation9], 256
        $region76: #{tpu_custom_call.1} parent=59 // pred_fallthru
          _
        // Predicated region
        $region77: #{tpu_custom_call.1} parent=59 // pred_check
          %p565 = pneg %p240
        $region78: #{tpu_custom_call.1} parent=59 // pred_check_branch
          %567 = sbr.rel (%p565) target = $region80
        $region79: #{tpu_custom_call.1} parent=59 // pred_region
          %568 = dma.done [#allocation9], 256
        $region80: #{tpu_custom_call.1} parent=59 // pred_fallthru
          _
        %s569 = sand.u32 %s54, 1
        %s570 = scalar_lea.sflag [#allocation3], %s569
        %s571 = sand.u32 %s54, 1
        %s572 = smul.addr %s571, 16
        %s573 = scalar_lea.vmem [#allocation2], %s572
        %p574 = pneg %p67
        %p575 = pneg %p64
        %s576 = sand.u32 %s46, 1
        %s577 = scalar_lea.sflag [#allocation6], %s576
        %s578 = sand.u32 %s80, 1
        %s579 = smul.addr %s578, 16
        %s580 = scalar_lea.vmem [#allocation5], %s579
        %p581 = pneg %p93
        %p582 = pneg %p90
        %p583 = pneg %p114
        %p584 = pneg %p111
        %p585 = pneg %p135
        %p586 = pneg %p132
        %p587 = pneg %p156
        %p588 = pneg %p153
        %p589 = pneg %p177
        %p590 = pneg %p174
        %p591 = pneg %p198
        %p592 = pneg %p195
        %p593 = pneg %p219
        %p594 = pneg %p216
        %p595 = pneg %p240
        %p596 = pneg %p237
        %p597 = pneg %p261
        %p598 = pneg %p258
        %p599 = pneg %p287
        %p600 = pneg %p284
        %s601 = sand.u32 %s274, 1
        %s602 = scalar_lea.sflag [#allocation4], %s601
        %s603 = sand.u32 %s274, 1
        %s604 = smul.addr %s603, 8
        %s605 = scalar_lea.vmem [#allocation11], %s604
        %p606 = pneg %p313
        %p607 = pneg %p310
        %s608 = sand.u32 %s46, 1
        %s609 = scalar_lea.sflag [#allocation13], %s608
        %s610 = sand.u32 %s300, 1
        %s611 = smul.addr %s610, 8
        %s612 = scalar_lea.vmem [#allocation12], %s611
        %p613 = pneg %p339
        %p614 = pneg %p336
        %s615 = sand.u32 %s46, 1
        %s616 = scalar_lea.sflag [#allocation13], %s615
        %s617 = sand.u32 %s326, 1
        %s618 = smul.addr %s617, 8
        %s619 = scalar_lea.vmem [#allocation14], %s618
        %p620 = pneg %p365
        %p621 = pneg %p362
        %s622 = sand.u32 %s46, 1
        %s623 = scalar_lea.sflag [#allocation16], %s622
        %s624 = sand.u32 %s352, 1
        %s625 = smul.addr %s624, 8
        %s626 = scalar_lea.vmem [#allocation15], %s625
        %p627 = pneg %p391
        %p628 = pneg %p388
        %s629 = sand.u32 %s46, 1
        %s630 = scalar_lea.sflag [#allocation16], %s629
        %s631 = sand.u32 %s378, 1
        %s632 = smul.addr %s631, 8
        %s633 = scalar_lea.vmem [#allocation17], %s632
        %p634 = pneg %p417
        %p635 = pneg %p414
        %s636 = sand.u32 %s404, 1
        %s637 = scalar_lea.sflag [#allocation19], %s636
        %s638 = sand.u32 %s404, 1
        %s639 = smul.addr %s638, 8
        %s640 = scalar_lea.vmem [#allocation18], %s639
        %v642 = vld [vmem:[%s543] sm:$0xff]
        %v643 = vld [vmem:[%s543 + $0x8] sm:$0xff]
        %v644 = vld [vmem:[%s2] sm:$0x1]
        %v645 = vld [vmem:[%s3] sm:$0x1]
        %vm646 = vcmask 261120
        %v647 = vsel %vm646, %v642, 0.0
        %648 = vadd.xlane.f32.xlu0 %v647
        %v649 = vpop.xlane.xlu0 %648
        %v650 = vsel %vm646, %v643, 0.0
        %651 = vadd.xlane.f32.xlu0 %v650
        %v652 = vpop.xlane.xlu0 %651
        %v653 = vrcp.pop 32.0
        %v654 = vmul.f32 %v649, %v653
        %v655 = vmul.f32 %v652, %v653
        %v656 = vsub.f32 %v642, %v654
        %v657 = vsub.f32 %v643, %v655
        %v658 = vmul.f32 %v656, %v656
        %v659 = vmul.f32 %v657, %v657
        %v660 = vsel %vm646, %v658, 0.0
        %661 = vadd.xlane.f32.xlu0 %v660
        %v662 = vpop.xlane.xlu0 %661
        %v663 = vsel %vm646, %v659, 0.0
        %664 = vadd.xlane.f32.xlu0 %v663
        %v665 = vpop.xlane.xlu0 %664
        %v666 = vmul.f32 %v662, %v653
        %v667 = vmul.f32 %v665, %v653
        %v668 = vadd.f32 %v666, 1e-05
        %v669 = vadd.f32 %v667, 1e-05
        %v670 = vrsqrt.pop %v668
        %v671 = vrsqrt.pop %v669
        %v672 = vmul.f32 %v656, %v670
        %v673 = vmul.f32 %v657, %v671
        %v675 = vlaneseq
        %v676 = vshrl.u32 %v675, 7
        %v677 = vsub.s32 0, %v676
        %v678 = vrot.slane %v644, %v677
        %v680 = vmul.f32 %v672, %v678
        %v681 = vmul.f32 %v673, %v678
        %v683 = vlaneseq
        %v684 = vshrl.u32 %v683, 7
        %v685 = vsub.s32 0, %v684
        %v686 = vrot.slane %v645, %v685
        %v688 = vadd.f32 %v680, %v686
        %v689 = vadd.f32 %v681, %v686
        %v690 = vpack.c.bf16 %v689, %v688
        %v691 = vld [vmem:[%s552] sm:$0xff]
        %v692 = vld [vmem:[%s552 + $0x8] sm:$0xff]
        %v693 = vld [vmem:[%s4] sm:$0x1]
        %v694 = vld [vmem:[%s5] sm:$0x1]
        %v695 = vsel %vm646, %v691, 0.0
        %696 = vadd.xlane.f32.xlu0 %v695
        %v697 = vpop.xlane.xlu0 %696
        %v698 = vsel %vm646, %v692, 0.0
        %699 = vadd.xlane.f32.xlu0 %v698
        %v700 = vpop.xlane.xlu0 %699
        %v701 = vmul.f32 %v697, %v653
        %v702 = vmul.f32 %v700, %v653
        %v703 = vsub.f32 %v691, %v701
        %v704 = vsub.f32 %v692, %v702
        %v705 = vmul.f32 %v703, %v703
        %v706 = vmul.f32 %v704, %v704
        %v707 = vsel %vm646, %v705, 0.0
        %708 = vadd.xlane.f32.xlu0 %v707
        %v709 = vpop.xlane.xlu0 %708
        %v710 = vsel %vm646, %v706, 0.0
        %711 = vadd.xlane.f32.xlu0 %v710
        %v712 = vpop.xlane.xlu0 %711
        %v713 = vmul.f32 %v709, %v653
        %v714 = vmul.f32 %v712, %v653
        %v715 = vadd.f32 %v713, 1e-05
        %v716 = vadd.f32 %v714, 1e-05
        %v717 = vrsqrt.pop %v715
        %v718 = vrsqrt.pop %v716
        %v719 = vmul.f32 %v703, %v717
        %v720 = vmul.f32 %v704, %v718
        %v722 = vlaneseq
        %v723 = vshrl.u32 %v722, 7
        %v724 = vsub.s32 0, %v723
        %v725 = vrot.slane %v693, %v724
        %v727 = vmul.f32 %v719, %v725
        %v728 = vmul.f32 %v720, %v725
        %v730 = vlaneseq
        %v731 = vshrl.u32 %v730, 7
        %v732 = vsub.s32 0, %v731
        %v733 = vrot.slane %v694, %v732
        %v735 = vadd.f32 %v727, %v733
        %v736 = vadd.f32 %v728, %v733
        %v737 = vpack.c.bf16 %v736, %v735
        %v738 = vld [vmem:[#allocation7] sm:$0xf]
        %v739 = vld [vmem:[#allocation7 + $0x4] sm:$0xf]
        %v740 = vld [vmem:[#allocation7 + $0x8] sm:$0xf]
        %v741 = vld [vmem:[#allocation7 + $0xc] sm:$0xf]
        %v746 = vunpack.c.l.b16 %v738
        %v747 = vunpack.c.l.b16 %v739
        %v748 = vunpack.c.l.b16 %v740
        %v749 = vunpack.c.l.b16 %v741
        %v750 = vpack.c.b16 %v747, %v746
        %v751 = vpack.c.b16 %v749, %v748
        %v755 = vsel %vm646, %v690, 0
        %757 = vmatprep.subr.bf16.mxu0 0
        %758 = vmatpush1.bf16.msra.mxu0 0
        %759 = vmatprep.subr.bf16.mxu0 0
        %760 = vmatpush1.bf16.msra.mxu0 0
        %761 = vmatprep.subr.bf16.mxu0 0
        %762 = vmatpush1.bf16.msra.mxu0 0
        %763 = vmatprep.subr.bf16.mxu0 0
        %764 = vmatpush1.bf16.msra.mxu0 0
        %765 = vmatprep.subr.bf16.mxu0 0
        %766 = vmatpush1.bf16.msra.mxu0 0
        %767 = vmatprep.subr.bf16.mxu0 0
        %768 = vmatpush1.bf16.msra.mxu0 0
        %769 = vmatprep.subr.bf16.mxu0 0
        %770 = vmatpush1.bf16.msra.mxu0 %v751
        %771 = vmatprep.subr.bf16.mxu0 0
        %772 = vmatpush1.bf16.msra.mxu0 %v750
        %773 = vmatprep.subr.bf16.mxu0 0
        %774 = vmatpush2.bf16.msra.mxu0 0
        %775 = vmatprep.subr.bf16.mxu0 0
        %776 = vmatpush2.bf16.msra.mxu0 0
        %777 = vmatprep.subr.bf16.mxu0 0
        %778 = vmatpush2.bf16.msra.mxu0 0
        %779 = vmatprep.subr.bf16.mxu0 0
        %780 = vmatpush2.bf16.msra.mxu0 0
        %781 = vmatprep.subr.bf16.mxu0 0
        %782 = vmatpush2.bf16.msra.mxu0 0
        %783 = vmatprep.subr.bf16.mxu0 0
        %784 = vmatpush2.bf16.msra.mxu0 0
        %785 = vmatprep.subr.bf16.mxu0 0
        %786 = vmatpush2.bf16.msra.mxu0 0
        %787 = vmatprep.subr.bf16.mxu0 0
        %788 = vmatpush2.bf16.msra.mxu0 0
        %789 = vmatprep.mubr.bf16.mxu0 0
        %790 = vmatmul.mubr.bf16.gmra.mxu0 %v755
        %v791 = vpop.f32.mrf.mxu0
        %v792 = vadd.f32 0.0, %v791
        %v793 = vpop.f32.mrf.mxu0
        %v794 = vpop.f32.mrf.mxu0
        %v795 = vadd.f32 0.0, %v794
        %v796 = vpop.f32.mrf.mxu0
        %797 = vdwg.mxu0
        %v798 = vpack.c.bf16 %v795, %v792
        %v800 = vunpack.c.l.b16 %v798
        %v801 = vunpack.c.h.b16 %v798
        %v802 = vpack.c.b16 %v800, %v800
        %v803 = vpack.c.b16 %v801, %v801
        %vm806 = vcmask 257024
        %807 = vst.msk [vmem:[%s605] sm:$0xf] %vm806, %v802
        %808 = vst.msk [vmem:[%s605 + $0x4] sm:$0xf] %vm806, %v803
        %809 = vrot.lane.b32.xlu0 %v802, 96
        %v810 = vpop.permute.xlu0 %809
        %811 = vrot.lane.b32.xlu0 %v803, 96
        %v812 = vpop.permute.xlu0 %811
        %815 = vst.msk [vmem:[%s612] sm:$0xf] %vm806, %v810
        %816 = vst.msk [vmem:[%s612 + $0x4] sm:$0xf] %vm806, %v812
        %v817 = vld [vmem:[#allocation8] sm:$0xf]
        %v818 = vld [vmem:[#allocation8 + $0x4] sm:$0xf]
        %v819 = vld [vmem:[#allocation8 + $0x8] sm:$0xf]
        %v820 = vld [vmem:[#allocation8 + $0xc] sm:$0xf]
        %v825 = vunpack.c.l.b16 %v817
        %v826 = vunpack.c.l.b16 %v818
        %v827 = vunpack.c.l.b16 %v819
        %v828 = vunpack.c.l.b16 %v820
        %v829 = vpack.c.b16 %v826, %v825
        %v830 = vpack.c.b16 %v828, %v827
        %v834 = vsel %vm646, %v737, 0
        %836 = vmatprep.subr.bf16.mxu0 0
        %837 = vmatpush1.bf16.msra.mxu0 0
        %838 = vmatprep.subr.bf16.mxu0 0
        %839 = vmatpush1.bf16.msra.mxu0 0
        %840 = vmatprep.subr.bf16.mxu0 0
        %841 = vmatpush1.bf16.msra.mxu0 0
        %842 = vmatprep.subr.bf16.mxu0 0
        %843 = vmatpush1.bf16.msra.mxu0 0
        %844 = vmatprep.subr.bf16.mxu0 0
        %845 = vmatpush1.bf16.msra.mxu0 0
        %846 = vmatprep.subr.bf16.mxu0 0
        %847 = vmatpush1.bf16.msra.mxu0 0
        %848 = vmatprep.subr.bf16.mxu0 0
        %849 = vmatpush1.bf16.msra.mxu0 %v830
        %850 = vmatprep.subr.bf16.mxu0 0
        %851 = vmatpush1.bf16.msra.mxu0 %v829
        %852 = vmatprep.subr.bf16.mxu0 0
        %853 = vmatpush2.bf16.msra.mxu0 0
        %854 = vmatprep.subr.bf16.mxu0 0
        %855 = vmatpush2.bf16.msra.mxu0 0
        %856 = vmatprep.subr.bf16.mxu0 0
        %857 = vmatpush2.bf16.msra.mxu0 0
        %858 = vmatprep.subr.bf16.mxu0 0
        %859 = vmatpush2.bf16.msra.mxu0 0
        %860 = vmatprep.subr.bf16.mxu0 0
        %861 = vmatpush2.bf16.msra.mxu0 0
        %862 = vmatprep.subr.bf16.mxu0 0
        %863 = vmatpush2.bf16.msra.mxu0 0
        %864 = vmatprep.subr.bf16.mxu0 0
        %865 = vmatpush2.bf16.msra.mxu0 0
        %866 = vmatprep.subr.bf16.mxu0 0
        %867 = vmatpush2.bf16.msra.mxu0 0
        %868 = vmatprep.mubr.bf16.mxu0 0
        %869 = vmatmul.mubr.bf16.gmra.mxu0 %v834
        %v870 = vpop.f32.mrf.mxu0
        %v871 = vadd.f32 0.0, %v870
        %v872 = vpop.f32.mrf.mxu0
        %v873 = vpop.f32.mrf.mxu0
        %v874 = vadd.f32 0.0, %v873
        %v875 = vpop.f32.mrf.mxu0
        %876 = vdwg.mxu0
        %v877 = vxor.u32 %v871, 2147483648
        %v878 = vxor.u32 %v874, 2147483648
        %v879 = vmul.f32 %v877, 1.442695
        %v880 = vpow.pop %v879
        %v881 = vmul.f32 %v878, 1.442695
        %v882 = vpow.pop %v881
        %v883 = vadd.f32 %v880, 1.0
        %v884 = vadd.f32 %v882, 1.0
        %v885 = vrcp.pop %v883
        %v886 = vmul.f32 1.0, %v885
        %v887 = vrcp.pop %v884
        %v888 = vmul.f32 1.0, %v887
        %v889 = vmul.f32 %v871, %v886
        %v890 = vmul.f32 %v874, %v888
        %v891 = vpack.c.bf16 %v890, %v889
        %v892 = vld [vmem:[#allocation10] sm:$0xf]
        %v893 = vld [vmem:[#allocation10 + $0x4] sm:$0xf]
        %v894 = vld [vmem:[#allocation10 + $0x8] sm:$0xf]
        %v895 = vld [vmem:[#allocation10 + $0xc] sm:$0xf]
        %v896 = vld [vmem:[%s9] sm:$0x1]
        %v898 = vlaneseq
        %v899 = vshrl.u32 %v898, 7
        %v900 = vsub.s32 0, %v899
        %v901 = vrot.slane %v896, %v900
        %v907 = vunpack.c.l.b16 %v892
        %v908 = vunpack.c.l.b16 %v893
        %v909 = vunpack.c.l.b16 %v894
        %v910 = vunpack.c.l.b16 %v895
        %v911 = vpack.c.b16 %v908, %v907
        %v912 = vpack.c.b16 %v910, %v909
        %v916 = vsel %vm646, %v891, 0
        %918 = vmatprep.subr.bf16.mxu0 0
        %919 = vmatpush1.bf16.msra.mxu0 0
        %920 = vmatprep.subr.bf16.mxu0 0
        %921 = vmatpush1.bf16.msra.mxu0 0
        %922 = vmatprep.subr.bf16.mxu0 0
        %923 = vmatpush1.bf16.msra.mxu0 0
        %924 = vmatprep.subr.bf16.mxu0 0
        %925 = vmatpush1.bf16.msra.mxu0 0
        %926 = vmatprep.subr.bf16.mxu0 0
        %927 = vmatpush1.bf16.msra.mxu0 0
        %928 = vmatprep.subr.bf16.mxu0 0
        %929 = vmatpush1.bf16.msra.mxu0 0
        %930 = vmatprep.subr.bf16.mxu0 0
        %931 = vmatpush1.bf16.msra.mxu0 %v912
        %932 = vmatprep.subr.bf16.mxu0 0
        %933 = vmatpush1.bf16.msra.mxu0 %v911
        %934 = vmatprep.subr.bf16.mxu0 0
        %935 = vmatpush2.bf16.msra.mxu0 0
        %936 = vmatprep.subr.bf16.mxu0 0
        %937 = vmatpush2.bf16.msra.mxu0 0
        %938 = vmatprep.subr.bf16.mxu0 0
        %939 = vmatpush2.bf16.msra.mxu0 0
        %940 = vmatprep.subr.bf16.mxu0 0
        %941 = vmatpush2.bf16.msra.mxu0 0
        %942 = vmatprep.subr.bf16.mxu0 0
        %943 = vmatpush2.bf16.msra.mxu0 0
        %944 = vmatprep.subr.bf16.mxu0 0
        %945 = vmatpush2.bf16.msra.mxu0 0
        %946 = vmatprep.subr.bf16.mxu0 0
        %947 = vmatpush2.bf16.msra.mxu0 0
        %948 = vmatprep.subr.bf16.mxu0 0
        %949 = vmatpush2.bf16.msra.mxu0 0
        %950 = vmatprep.mubr.bf16.mxu0 0
        %951 = vmatmul.mubr.bf16.gmra.mxu0 %v916
        %v952 = vpop.f32.mrf.mxu0
        %v953 = vadd.f32 %v901, %v952
        %v954 = vpop.f32.mrf.mxu0
        %v955 = vpop.f32.mrf.mxu0
        %v956 = vadd.f32 %v901, %v955
        %v957 = vpop.f32.mrf.mxu0
        %958 = vdwg.mxu0
        %v959 = vmax.f32 %v953, 0.0
        %v960 = vmax.f32 %v956, 0.0
        %vm961 = vcmp.ne.f32.partialorder %v953, %v953
        %vm962 = vcmp.ne.f32.partialorder %v956, %v956
        %v963 = vadd.f32 %v953, 0.0
        %v964 = vadd.f32 %v956, 0.0
        %v965 = vand.u32 2147483647, %v953
        %v966 = vand.u32 2147483647, %v956
        %v967 = vsub.f32 0.0, %v965
        %v968 = vsub.f32 0.0, %v966
        %v969 = vmul.f32 %v967, 1.442695
        %v970 = vpow.pop %v969
        %v971 = vmul.f32 %v968, 1.442695
        %v972 = vpow.pop %v971
        %v973 = vadd.f32 %v970, 1.0
        %v974 = vlog2.pop %v973
        %v975 = vmul.f32 %v974, 0.6931472
        %v976 = vmul.f32 -0.5, %v970
        %v977 = vadd.f32 %v976, 1.0
        %v978 = vmul.f32 %v977, %v970
        %v979 = vand.u32 2147483647, %v970
        %vm980 = vcmp.lt.f32.partialorder %v979, 0.0004427343
        %v981 = vsel %vm980, %v978, %v975
        %v982 = vadd.f32 %v972, 1.0
        %v983 = vlog2.pop %v982
        %v984 = vmul.f32 %v983, 0.6931472
        %v985 = vmul.f32 -0.5, %v972
        %v986 = vadd.f32 %v985, 1.0
        %v987 = vmul.f32 %v986, %v972
        %v988 = vand.u32 2147483647, %v972
        %vm989 = vcmp.lt.f32.partialorder %v988, 0.0004427343
        %v990 = vsel %vm989, %v987, %v984
        %v991 = vadd.f32 %v959, %v981
        %v992 = vadd.f32 %v960, %v990
        %v993 = vsel %vm961, %v963, %v991
        %v994 = vsel %vm962, %v964, %v992
        %v995 = vpack.c.bf16 %v994, %v993
        %v997 = vunpack.c.l.b16 %v995
        %v998 = vunpack.c.h.b16 %v995
        %v999 = vpack.c.b16 %v997, %v997
        %v1000 = vpack.c.b16 %v998, %v998
        %1003 = vst.msk [vmem:[%s619] sm:$0xf] %vm806, %v999
        %1004 = vst.msk [vmem:[%s619 + $0x4] sm:$0xf] %vm806, %v1000
        %1005 = vrot.lane.b32.xlu0 %v999, 96
        %v1006 = vpop.permute.xlu0 %1005
        %1007 = vrot.lane.b32.xlu0 %v1000, 96
        %v1008 = vpop.permute.xlu0 %1007
        %1011 = vst.msk [vmem:[%s626] sm:$0xf] %vm806, %v1006
        %1012 = vst.msk [vmem:[%s626 + $0x4] sm:$0xf] %vm806, %v1008
        %v1013 = vpack.c.bf16 %v956, %v953
        %v1015 = vunpack.c.l.b16 %v1013
        %v1016 = vunpack.c.h.b16 %v1013
        %v1017 = vpack.c.b16 %v1015, %v1015
        %v1018 = vpack.c.b16 %v1016, %v1016
        %1019 = vrot.lane.b32.xlu0 %v1017, 64
        %v1020 = vpop.permute.xlu0 %1019
        %1021 = vrot.lane.b32.xlu0 %v1018, 64
        %v1022 = vpop.permute.xlu0 %1021
        %vm1025 = vcmask 125952
        %1026 = vst.msk [vmem:[%s633] sm:$0xf] %vm1025, %v1020
        %1027 = vst.msk [vmem:[%s633 + $0x4] sm:$0xf] %vm1025, %v1022
        %1028 = vrot.lane.b32.xlu0 %v1017, 48
        %v1029 = vpop.permute.xlu0 %1028
        %1030 = vrot.lane.b32.xlu0 %v1018, 48
        %v1031 = vpop.permute.xlu0 %1030
        %1034 = vst.msk [vmem:[%s640] sm:$0xf] %vm1025, %v1029
        %1035 = vst.msk [vmem:[%s640 + $0x4] sm:$0xf] %vm1025, %v1031
        %s1036 = sand.u32 %s274, 1
        %s1037 = scalar_lea.sflag [#allocation4], %s1036
        %s1038 = sand.u32 %s274, 1
        %s1039 = smul.addr %s1038, 8
        %s1040 = scalar_lea.vmem [#allocation11], %s1039
        %s1041 = sand.u32 %s46, 1
        %s1042 = scalar_lea.sflag [#allocation13], %s1041
        %s1043 = sand.u32 %s300, 1
        %s1044 = smul.addr %s1043, 8
        %s1045 = scalar_lea.vmem [#allocation12], %s1044
        %s1046 = sand.u32 %s46, 1
        %s1047 = scalar_lea.sflag [#allocation13], %s1046
        %s1048 = sand.u32 %s326, 1
        %s1049 = smul.addr %s1048, 8
        %s1050 = scalar_lea.vmem [#allocation14], %s1049
        %s1051 = sand.u32 %s46, 1
        %s1052 = scalar_lea.sflag [#allocation16], %s1051
        %s1053 = sand.u32 %s352, 1
        %s1054 = smul.addr %s1053, 8
        %s1055 = scalar_lea.vmem [#allocation15], %s1054
        %s1056 = sand.u32 %s46, 1
        %s1057 = scalar_lea.sflag [#allocation16], %s1056
        %s1058 = sand.u32 %s378, 1
        %s1059 = smul.addr %s1058, 8
        %s1060 = scalar_lea.vmem [#allocation17], %s1059
        %s1061 = sand.u32 %s404, 1
        %s1062 = scalar_lea.sflag [#allocation19], %s1061
        %s1063 = sand.u32 %s404, 1
        %s1064 = smul.addr %s1063, 8
        %s1065 = scalar_lea.vmem [#allocation18], %s1064
        // Predicated region
        $region81: #{tpu_custom_call.1} parent=59 // pred_check
          %p1066 = pneg %p284
        $region82: #{tpu_custom_call.1} parent=59 // pred_check_branch
          %1068 = sbr.rel (%p1066) target = $region84
        $region83: #{tpu_custom_call.1} parent=59 // pred_region
          %s1070 = ssub.s32 128, 128
          %1071 = vsyncadd %s1037, %s1070
          %s1072 = smul.addr %s46, 2
          %s1073 = smul.addr %s1072, 64
          %s1074 = scalar_lea.hbm %s10, %s1073
          %s1075 = sshll.u32 %s1040, 4
          %s1076 = int_to_ptr.vmem [resolvable:$true] %s1075
          %1081 = dma.vmem_to_hbm [thread:$0]  %s1076, 128, %s1074, %s1037, 64, 64, 4
        $region84: #{tpu_custom_call.1} parent=59 // pred_fallthru
          _
        // Predicated region
        $region85: #{tpu_custom_call.1} parent=59 // pred_check
          %p1082 = pneg %p310
        $region86: #{tpu_custom_call.1} parent=59 // pred_check_branch
          %1084 = sbr.rel (%p1082) target = $region88
        $region87: #{tpu_custom_call.1} parent=59 // pred_region
          %s1086 = ssub.s32 128, 128
          %1087 = vsyncadd %s1042, %s1086
          %s1088 = smul.addr %s46, 2
          %s1089 = smul.addr %s1088, 64
          %s1090 = scalar_lea.hbm %s11, %s1089
          %s1091 = sshll.u32 %s1045, 4
          %s1092 = int_to_ptr.vmem [resolvable:$true] %s1091
          %1097 = dma.vmem_to_hbm [thread:$0]  %s1092, 128, %s1090, %s1042, 64, 64, 4
        $region88: #{tpu_custom_call.1} parent=59 // pred_fallthru
          _
        // Predicated region
        $region89: #{tpu_custom_call.1} parent=59 // pred_check
          %p1098 = pneg %p336
        $region90: #{tpu_custom_call.1} parent=59 // pred_check_branch
          %1100 = sbr.rel (%p1098) target = $region92
        $region91: #{tpu_custom_call.1} parent=59 // pred_region
          %s1102 = ssub.s32 128, 128
          %1103 = vsyncadd %s1047, %s1102
          %s1104 = smul.addr %s46, 2
          %s1105 = smul.addr %s1104, 64
          %s1106 = scalar_lea.hbm %s12, %s1105
          %s1107 = sshll.u32 %s1050, 4
          %s1108 = int_to_ptr.vmem [resolvable:$true] %s1107
          %1113 = dma.vmem_to_hbm [thread:$0]  %s1108, 128, %s1106, %s1047, 64, 64, 4
        $region92: #{tpu_custom_call.1} parent=59 // pred_fallthru
          _
        // Predicated region
        $region93: #{tpu_custom_call.1} parent=59 // pred_check
          %p1114 = pneg %p362
        $region94: #{tpu_custom_call.1} parent=59 // pred_check_branch
          %1116 = sbr.rel (%p1114) target = $region96
        $region95: #{tpu_custom_call.1} parent=59 // pred_region
          %s1118 = ssub.s32 128, 128
          %1119 = vsyncadd %s1052, %s1118
          %s1120 = smul.addr %s46, 2
          %s1121 = smul.addr %s1120, 64
          %s1122 = scalar_lea.hbm %s13, %s1121
          %s1123 = sshll.u32 %s1055, 4
          %s1124 = int_to_ptr.vmem [resolvable:$true] %s1123
          %1129 = dma.vmem_to_hbm [thread:$0]  %s1124, 128, %s1122, %s1052, 64, 64, 4
        $region96: #{tpu_custom_call.1} parent=59 // pred_fallthru
          _
        // Predicated region
        $region97: #{tpu_custom_call.1} parent=59 // pred_check
          %p1130 = pneg %p388
        $region98: #{tpu_custom_call.1} parent=59 // pred_check_branch
          %1132 = sbr.rel (%p1130) target = $region100
        $region99: #{tpu_custom_call.1} parent=59 // pred_region
          %s1134 = ssub.s32 128, 128
          %1135 = vsyncadd %s1057, %s1134
          %s1136 = smul.addr %s46, 2
          %s1137 = smul.addr %s1136, 64
          %s1138 = scalar_lea.hbm %s14, %s1137
          %s1139 = sshll.u32 %s1060, 4
          %s1140 = int_to_ptr.vmem [resolvable:$true] %s1139
          %1145 = dma.vmem_to_hbm [thread:$0]  %s1140, 128, %s1138, %s1057, 64, 64, 4
        $region100: #{tpu_custom_call.1} parent=59 // pred_fallthru
          _
        // Predicated region
        $region101: #{tpu_custom_call.1} parent=59 // pred_check
          %p1146 = pneg %p414
        $region102: #{tpu_custom_call.1} parent=59 // pred_check_branch
          %1148 = sbr.rel (%p1146) target = $region104
        $region103: #{tpu_custom_call.1} parent=59 // pred_region
          %s1150 = ssub.s32 128, 128
          %1151 = vsyncadd %s1062, %s1150
          %s1152 = smul.addr %s46, 2
          %s1153 = smul.addr %s1152, 64
          %s1154 = scalar_lea.hbm %s15, %s1153
          %s1155 = sshll.u32 %s1065, 4
          %s1156 = int_to_ptr.vmem [resolvable:$true] %s1155
          %1161 = dma.vmem_to_hbm [thread:$0]  %s1156, 128, %s1154, %s1062, 64, 64, 4
        $region104: #{tpu_custom_call.1} parent=59 // pred_fallthru
          _
      $region60: #{tpu_custom_call.1} parent=5 // pred_fallthru
        _
      %p1162 = scmp.le.s32.totalorder 2, %s41
      // Predicated region
      $region105: #{tpu_custom_call.1} parent=5 // pred_check
        %p1163 = pneg %p1162
      $region106: #{tpu_custom_call.1} parent=5 // pred_check_branch
        %1165 = sbr.rel (%p1163) target = $region108
      $region107: #{tpu_custom_call.1} parent=5 // pred_region
        %s1166 = ssub.s32 %s41, 2
        // Predicated region
        $region109: #{tpu_custom_call.1} parent=107 // pred_check
          %p1167 = pneg %p290
        $region110: #{tpu_custom_call.1} parent=107 // pred_check_branch
          %1169 = sbr.rel (%p1167) target = $region112
        $region111: #{tpu_custom_call.1} parent=107 // pred_region
          %s1170 = sand.u32 %s275, 1
          %s1171 = scalar_lea.sflag [#allocation4], %s1170
          %s1172 = sand.u32 %s275, 1
          %s1173 = smul.addr %s1172, 8
          %s1174 = scalar_lea.vmem [#allocation11], %s1173
          %1175 = dma.done %s1171, 128
        $region112: #{tpu_custom_call.1} parent=107 // pred_fallthru
          _
        // Predicated region
        $region113: #{tpu_custom_call.1} parent=107 // pred_check
          %p1176 = pneg %p316
        $region114: #{tpu_custom_call.1} parent=107 // pred_check_branch
          %1178 = sbr.rel (%p1176) target = $region116
        $region115: #{tpu_custom_call.1} parent=107 // pred_region
          %s1179 = sand.u32 %s47, 1
          %s1180 = scalar_lea.sflag [#allocation13], %s1179
          %s1181 = sand.u32 %s301, 1
          %s1182 = smul.addr %s1181, 8
          %s1183 = scalar_lea.vmem [#allocation12], %s1182
          %1184 = dma.done %s1180, 128
        $region116: #{tpu_custom_call.1} parent=107 // pred_fallthru
          _
        // Predicated region
        $region117: #{tpu_custom_call.1} parent=107 // pred_check
          %p1185 = pneg %p342
        $region118: #{tpu_custom_call.1} parent=107 // pred_check_branch
          %1187 = sbr.rel (%p1185) target = $region120
        $region119: #{tpu_custom_call.1} parent=107 // pred_region
          %s1188 = sand.u32 %s47, 1
          %s1189 = scalar_lea.sflag [#allocation13], %s1188
          %s1190 = sand.u32 %s327, 1
          %s1191 = smul.addr %s1190, 8
          %s1192 = scalar_lea.vmem [#allocation14], %s1191
          %1193 = dma.done %s1189, 128
        $region120: #{tpu_custom_call.1} parent=107 // pred_fallthru
          _
        // Predicated region
        $region121: #{tpu_custom_call.1} parent=107 // pred_check
          %p1194 = pneg %p368
        $region122: #{tpu_custom_call.1} parent=107 // pred_check_branch
          %1196 = sbr.rel (%p1194) target = $region124
        $region123: #{tpu_custom_call.1} parent=107 // pred_region
          %s1197 = sand.u32 %s47, 1
          %s1198 = scalar_lea.sflag [#allocation16], %s1197
          %s1199 = sand.u32 %s353, 1
          %s1200 = smul.addr %s1199, 8
          %s1201 = scalar_lea.vmem [#allocation15], %s1200
          %1202 = dma.done %s1198, 128
        $region124: #{tpu_custom_call.1} parent=107 // pred_fallthru
          _
        // Predicated region
        $region125: #{tpu_custom_call.1} parent=107 // pred_check
          %p1203 = pneg %p394
        $region126: #{tpu_custom_call.1} parent=107 // pred_check_branch
          %1205 = sbr.rel (%p1203) target = $region128
        $region127: #{tpu_custom_call.1} parent=107 // pred_region
          %s1206 = sand.u32 %s47, 1
          %s1207 = scalar_lea.sflag [#allocation16], %s1206
          %s1208 = sand.u32 %s379, 1
          %s1209 = smul.addr %s1208, 8
          %s1210 = scalar_lea.vmem [#allocation17], %s1209
          %1211 = dma.done %s1207, 128
        $region128: #{tpu_custom_call.1} parent=107 // pred_fallthru
          _
        // Predicated region
        $region129: #{tpu_custom_call.1} parent=107 // pred_check
          %p1212 = pneg %p420
        $region130: #{tpu_custom_call.1} parent=107 // pred_check_branch
          %1214 = sbr.rel (%p1212) target = $region132
        $region131: #{tpu_custom_call.1} parent=107 // pred_region
          %s1215 = sand.u32 %s405, 1
          %s1216 = scalar_lea.sflag [#allocation19], %s1215
          %s1217 = sand.u32 %s405, 1
          %s1218 = smul.addr %s1217, 8
          %s1219 = scalar_lea.vmem [#allocation18], %s1218
          %1220 = dma.done %s1216, 128
        $region132: #{tpu_custom_call.1} parent=107 // pred_fallthru
          _
      $region108: #{tpu_custom_call.1} parent=5 // pred_fallthru
        _
    $region6: #{tpu_custom_call.1} parent=1 // loop_footer
      %s45 = sadd.s32 1, %s41
    $region7: #{tpu_custom_call.1} parent=1 // loop_footer_branch
      %40 = sbr.rel target = $region3
    $region8: #{tpu_custom_call.1} parent=1 // loop_exit
      _
    %1221 = vsyncpa [#allocation3], 1
    %s1222 = scalar_lea.sflag [#allocation3], 1
    %1223 = vsyncpa %s1222, 1
    %1224 = vsyncpa [#allocation6], 1
    %s1225 = scalar_lea.sflag [#allocation6], 1
    %1226 = vsyncpa %s1225, 1
    %1227 = vsyncpa [#allocation9], 1
    %1228 = vsyncpa [#allocation4], 1
    %s1229 = scalar_lea.sflag [#allocation4], 1
    %1230 = vsyncpa %s1229, 1
    %1231 = vsyncpa [#allocation13], 1
    %s1232 = scalar_lea.sflag [#allocation13], 1
    %1233 = vsyncpa %s1232, 1
    %1234 = vsyncpa [#allocation16], 1
    %s1235 = scalar_lea.sflag [#allocation16], 1
    %1236 = vsyncpa %s1235, 1
    %1237 = vsyncpa [#allocation19], 1
    %s1238 = scalar_lea.sflag [#allocation19], 1
    %1239 = vsyncpa %s1238, 1

</llo_original>
